<compile_context>
chip_gen: v7x
topology: tpu7x:2x2x1
jax: 0.10.0
libtpu: 0.0.40
codegen_flags: <defaults>
</compile_context>

<pallas_src>
import functools

import numpy as np
import jax
import jax.numpy as jnp
from jax.experimental import pallas as pl
from jax.experimental.pallas import tpu as pltpu

LANE = 128
SUBLANE = 8
MAX_TILE_M = 1024  # v5e scoped-VMEM-safe cap; fine for v6e/v7x as well.


def _round_up(x, m):
    return ((x + m - 1) // m) * m


def _cdiv(a, b):
    return (a + b - 1) // b


def _mlp_kernel(x_ref,
                w1_ref, b1_ref,
                w2_ref, b2_ref,
                w3_ref, b3_ref,
                w4_ref, b4_ref,
                w5_ref, b5_ref,
                o_ref):
    """Fused (Linear -> ReLU) x 4 -> Linear for one batch tile."""
    h = x_ref[...].astype(jnp.bfloat16)

    def dense_relu(h_bf16, w_ref, b_ref):
        acc = jnp.dot(h_bf16, w_ref[...], preferred_element_type=jnp.float32)
        acc = jnp.maximum(acc + b_ref[...], 0.0)
        return acc.astype(jnp.bfloat16)

    h = dense_relu(h, w1_ref, b1_ref)
    h = dense_relu(h, w2_ref, b2_ref)
    h = dense_relu(h, w3_ref, b3_ref)
    h = dense_relu(h, w4_ref, b4_ref)

    out = jnp.dot(h, w5_ref[...], preferred_element_type=jnp.float32) + b5_ref[...]
    o_ref[...] = out.astype(o_ref.dtype)


def _choose_tile_m(batch, max_tile_m=MAX_TILE_M):
    """Pick a sublane-aligned batch tile.

    Goals: (a) big tiles to amortize per-grid-step overhead, (b) >= 2 grid
    steps when batch permits so v7x's two TensorCores both get work, and
    (c) padding waste bounded by ~one sublane group per tile.
    """
    rows = _round_up(batch, SUBLANE)
    n_tiles = max(_cdiv(rows, max_tile_m), 2 if rows >= 2 * SUBLANE else 1)
    return _round_up(_cdiv(rows, n_tiles), SUBLANE)


def _pallas_forward(x_pad, padded_params, *, tile_m, grid_m, input_bands,
                    out_pad_dim, out_dtype, cost, single_buffer_weights):
    padded_batch = x_pad.shape[0]

    flat_args = [x_pad]
    in_specs = [pl.BlockSpec((tile_m, input_bands), lambda i: (i, 0))]
    for w_p, b_p in padded_params:
        for arr in (w_p, b_p):
            flat_args.append(arr)
            if single_buffer_weights:
                # Constant index_map -> never re-fetched; one buffer is enough.
                in_specs.append(pl.BlockSpec(arr.shape, lambda i: (0, 0),
                                             pipeline_mode=pl.Buffered(1)))
            else:
                in_specs.append(pl.BlockSpec(arr.shape, lambda i: (0, 0)))
    out_specs = pl.BlockSpec((tile_m, out_pad_dim), lambda i: (i, 0))

    return pl.pallas_call(
        _mlp_kernel,
        grid=(grid_m,),
        in_specs=in_specs,
        out_specs=out_specs,
        out_shape=jax.ShapeDtypeStruct((padded_batch, out_pad_dim), out_dtype),
        compiler_params=pltpu.CompilerParams(
            dimension_semantics=("parallel",)),
        cost_estimate=cost,
    )(*flat_args)


def classifier_net_src_forward(x, params, *, tile_m=None,
                               out_dtype=jnp.bfloat16):
    """x: (batch, input_bands) f32.

    params: list of 5 (W, b) pairs with W of shape (in_features, out_features)
    and b of shape (1, out_features), matching the PyTorch module's layers.
    Returns (batch, class_num) logits in `out_dtype` (bf16 by default to halve
    the dominant HBM write stream; pass jnp.float32 for full-precision output).
    """
    batch, input_bands = x.shape
    class_num = params[-1][0].shape[1]

    # ---- Pad every hidden/output feature dim up to the 128-lane vreg width.
    # Padded weight columns / bias entries are zero, so ReLU(0 + 0) = 0 and
    # padded activation columns contribute nothing downstream -> same math.
    padded_params = []
    prev_out_pad = input_bands  # x feature dim stays unpadded (full-extent block is legal)
    for w, b in params:
        in_dim, out_dim = w.shape
        out_pad = _round_up(out_dim, LANE)
        w_p = jnp.zeros((prev_out_pad, out_pad), jnp.float32).at[:in_dim, :out_dim].set(w)
        b_p = jnp.zeros((1, out_pad), jnp.float32).at[:, :out_dim].set(b.reshape(1, -1))
        padded_params.append((w_p.astype(jnp.bfloat16), b_p))
        prev_out_pad = out_pad
    out_pad_dim = padded_params[-1][0].shape[1]

    # ---- Batch tiling.
    if tile_m is None:
        tile_m = _choose_tile_m(batch)
    else:
        tile_m = max(SUBLANE, _round_up(int(tile_m), SUBLANE))
    padded_batch = _round_up(batch, tile_m)
    if padded_batch != batch:
        x = jnp.pad(x, ((0, padded_batch - batch), (0, 0)))
    grid_m = padded_batch // tile_m

    # ---- Cost estimate (padded sizes; bf16 weights = 2 bytes each).
    feat_dims = [input_bands] + [w.shape[1] for w, _ in padded_params]
    flops = 2 * padded_batch * sum(a * b for a, b in zip(feat_dims[:-1], feat_dims[1:]))
    out_itemsize = np.dtype(out_dtype).itemsize
    bytes_accessed = (padded_batch * input_bands * 4
                      + sum(w.size * 2 + b.size * 4 for w, b in padded_params)
                      + padded_batch * out_pad_dim * out_itemsize)
    cost = pl.CostEstimate(flops=int(flops), transcendentals=0,
                           bytes_accessed=int(bytes_accessed))

    run = functools.partial(
        _pallas_forward, x, padded_params,
        tile_m=tile_m, grid_m=grid_m, input_bands=input_bands,
        out_pad_dim=out_pad_dim, out_dtype=out_dtype, cost=cost)

    if hasattr(pl, "Buffered"):
        try:
            out_padded = run(single_buffer_weights=True)
        except Exception:
            # Graceful degradation if this Pallas build rejects Buffered(1)
            # on a BlockSpec; the default double-buffered path is identical
            # math and only costs a few hundred KB of VMEM.
            out_padded = run(single_buffer_weights=False)
    else:
        out_padded = run(single_buffer_weights=False)

    # Drop batch padding and the zero-padded class columns.
    return out_padded[:batch, :class_num]


def init_params(key, input_bands, class_num):
    """Deterministic init mirroring classifier_net_src's layer shapes."""
    dims = [input_bands, 32 * 8, 32 * 4, 32 * 2, 16, class_num]
    params = []
    for i in range(len(dims) - 1):
        key, kw, kb = jax.random.split(key, 3)
        fan_in, fan_out = dims[i], dims[i + 1]
        bound = 1.0 / (fan_in ** 0.5)  # PyTorch nn.Linear default uniform bound
        w = jax.random.uniform(kw, (fan_in, fan_out), jnp.float32, -bound, bound)
        b = jax.random.uniform(kb, (1, fan_out), jnp.float32, -bound, bound)
        params.append((w, b))
    return params


def reference_forward(x, params):
    """Pure-JAX reference with the same bf16-operand / f32-accum recipe."""
    h = x
    for i, (w, b) in enumerate(params):
        h = jnp.dot(h.astype(jnp.bfloat16), w.astype(jnp.bfloat16),
                    preferred_element_type=jnp.float32) + b.reshape(1, -1)
        if i < len(params) - 1:
            h = jnp.maximum(h, 0.0)
    return h


if __name__ == "__main__":
    key = jax.random.PRNGKey(0)
    input_bands, class_num = 32, 10

    key, kp = jax.random.split(key)
    params = init_params(kp, input_bands, class_num)

    # batch=8 exercises the single-tile path; batch=200 exercises grid=(2,)
    # (both TensorCores on v7x) plus ragged batch padding.
    for batch in (8, 200):
        key, kx = jax.random.split(key)
        x = jax.random.normal(kx, (batch, input_bands), jnp.float32)
        ref = reference_forward(x, params)

        # Default (bf16 writeback) path.
        out_bf16 = jax.block_until_ready(classifier_net_src_forward(x, params))
        assert out_bf16.shape == (batch, class_num)
        assert out_bf16.dtype == jnp.bfloat16
        err = float(jnp.max(jnp.abs(out_bf16.astype(jnp.float32) - ref)))
        assert jnp.allclose(out_bf16.astype(jnp.float32), ref,
                            atol=2e-2, rtol=2e-2), err

        # Full-precision writeback path.
        out_f32 = jax.block_until_ready(
            classifier_net_src_forward(x, params, out_dtype=jnp.float32))
        assert out_f32.shape == (batch, class_num)
        err = float(jnp.max(jnp.abs(out_f32 - ref)))
        assert jnp.allclose(out_f32, ref, atol=1e-3, rtol=1e-3), err

    print("KERNEL_OK")
</pallas_src>

<mosaic_0001>
module attributes {stable_mosaic.version = 11 : i64} {
  func.func @_mlp_kernel(%arg0: i32, %arg1: memref<8x32xf32, #tpu.memory_space<vmem>>, %arg2: memref<32x256xbf16, #tpu.memory_space<vmem>>, %arg3: memref<1x256xf32, #tpu.memory_space<vmem>>, %arg4: memref<256x128xbf16, #tpu.memory_space<vmem>>, %arg5: memref<1x128xf32, #tpu.memory_space<vmem>>, %arg6: memref<128x128xbf16, #tpu.memory_space<vmem>>, %arg7: memref<1x128xf32, #tpu.memory_space<vmem>>, %arg8: memref<128x128xbf16, #tpu.memory_space<vmem>>, %arg9: memref<1x128xf32, #tpu.memory_space<vmem>>, %arg10: memref<128x128xbf16, #tpu.memory_space<vmem>>, %arg11: memref<1x128xf32, #tpu.memory_space<vmem>>, %arg12: memref<8x128xbf16, #tpu.memory_space<vmem>>) attributes {dimension_semantics = [#tpu.dimension_semantics<parallel>], iteration_bounds = array<i64: 1>, scalar_prefetch = 0 : i64, scratch_operands = 0 : i64, tpu.core_type = #tpu.core_type<tc>, window_params = [{transform_indices = @transform_0, window_bounds = array<i64: 8, 32>}, {pipeline_mode = #tpu.pipeline_mode<synchronous>, transform_indices = @transform_1, window_bounds = array<i64: 32, 256>}, {pipeline_mode = #tpu.pipeline_mode<synchronous>, transform_indices = @transform_2, window_bounds = array<i64: 1, 256>}, {pipeline_mode = #tpu.pipeline_mode<synchronous>, transform_indices = @transform_3, window_bounds = array<i64: 256, 128>}, {pipeline_mode = #tpu.pipeline_mode<synchronous>, transform_indices = @transform_4, window_bounds = array<i64: 1, 128>}, {pipeline_mode = #tpu.pipeline_mode<synchronous>, transform_indices = @transform_5, window_bounds = array<i64: 128, 128>}, {pipeline_mode = #tpu.pipeline_mode<synchronous>, transform_indices = @transform_6, window_bounds = array<i64: 1, 128>}, {pipeline_mode = #tpu.pipeline_mode<synchronous>, transform_indices = @transform_7, window_bounds = array<i64: 128, 128>}, {pipeline_mode = #tpu.pipeline_mode<synchronous>, transform_indices = @transform_8, window_bounds = array<i64: 1, 128>}, {pipeline_mode = #tpu.pipeline_mode<synchronous>, transform_indices = @transform_9, window_bounds = array<i64: 128, 128>}, {pipeline_mode = #tpu.pipeline_mode<synchronous>, transform_indices = @transform_10, window_bounds = array<i64: 1, 128>}, {transform_indices = @transform_11, window_bounds = array<i64: 8, 128>}]} {
    %c0 = arith.constant 0 : index
    %c0_0 = arith.constant 0 : index
    %0 = vector.load %arg1[%c0, %c0_0] : memref<8x32xf32, #tpu.memory_space<vmem>>, vector<8x32xf32>
    %1 = arith.truncf %0 : vector<8x32xf32> to vector<8x32xbf16>
    %c0_1 = arith.constant 0 : index
    %c0_2 = arith.constant 0 : index
    %2 = vector.load %arg2[%c0_1, %c0_2] : memref<32x256xbf16, #tpu.memory_space<vmem>>, vector<32x256xbf16>
    %cst = arith.constant dense<0.000000e+00> : vector<8x256xf32>
    %3 = tpu.matmul %1, %2, %cst {dimension_numbers = #tpu.dot_dimension_numbers<[1], [0], [0], [1], [0, 0, 1, 1], [], []>} : vector<8x32xbf16>, vector<32x256xbf16>, vector<8x256xf32> -> vector<8x256xf32>
    %c0_3 = arith.constant 0 : index
    %c0_4 = arith.constant 0 : index
    %4 = vector.load %arg3[%c0_3, %c0_4] : memref<1x256xf32, #tpu.memory_space<vmem>>, vector<1x256xf32>
    %5 = vector.broadcast %4 : vector<1x256xf32> to vector<8x256xf32>
    %6 = arith.addf %3, %5 : vector<8x256xf32>
    %cst_5 = arith.constant 0.000000e+00 : f32
    %7 = vector.broadcast %cst_5 : f32 to vector<8x256xf32>
    %8 = arith.maximumf %6, %7 : vector<8x256xf32>
    %9 = arith.truncf %8 : vector<8x256xf32> to vector<8x256xbf16>
    %c0_6 = arith.constant 0 : index
    %c0_7 = arith.constant 0 : index
    %10 = vector.load %arg4[%c0_6, %c0_7] : memref<256x128xbf16, #tpu.memory_space<vmem>>, vector<256x128xbf16>
    %cst_8 = arith.constant dense<0.000000e+00> : vector<8x128xf32>
    %11 = tpu.matmul %9, %10, %cst_8 {dimension_numbers = #tpu.dot_dimension_numbers<[1], [0], [0], [1], [0, 0, 1, 1], [], []>} : vector<8x256xbf16>, vector<256x128xbf16>, vector<8x128xf32> -> vector<8x128xf32>
    %c0_9 = arith.constant 0 : index
    %c0_10 = arith.constant 0 : index
    %12 = vector.load %arg5[%c0_9, %c0_10] : memref<1x128xf32, #tpu.memory_space<vmem>>, vector<1x128xf32>
    %13 = vector.broadcast %12 : vector<1x128xf32> to vector<8x128xf32>
    %14 = arith.addf %11, %13 : vector<8x128xf32>
    %cst_11 = arith.constant 0.000000e+00 : f32
    %15 = vector.broadcast %cst_11 : f32 to vector<8x128xf32>
    %16 = arith.maximumf %14, %15 : vector<8x128xf32>
    %17 = arith.truncf %16 : vector<8x128xf32> to vector<8x128xbf16>
    %c0_12 = arith.constant 0 : index
    %c0_13 = arith.constant 0 : index
    %18 = vector.load %arg6[%c0_12, %c0_13] : memref<128x128xbf16, #tpu.memory_space<vmem>>, vector<128x128xbf16>
    %cst_14 = arith.constant dense<0.000000e+00> : vector<8x128xf32>
    %19 = tpu.matmul %17, %18, %cst_14 {dimension_numbers = #tpu.dot_dimension_numbers<[1], [0], [0], [1], [0, 0, 1, 1], [], []>} : vector<8x128xbf16>, vector<128x128xbf16>, vector<8x128xf32> -> vector<8x128xf32>
    %c0_15 = arith.constant 0 : index
    %c0_16 = arith.constant 0 : index
    %20 = vector.load %arg7[%c0_15, %c0_16] : memref<1x128xf32, #tpu.memory_space<vmem>>, vector<1x128xf32>
    %21 = vector.broadcast %20 : vector<1x128xf32> to vector<8x128xf32>
    %22 = arith.addf %19, %21 : vector<8x128xf32>
    %cst_17 = arith.constant 0.000000e+00 : f32
    %23 = vector.broadcast %cst_17 : f32 to vector<8x128xf32>
    %24 = arith.maximumf %22, %23 : vector<8x128xf32>
    %25 = arith.truncf %24 : vector<8x128xf32> to vector<8x128xbf16>
    %c0_18 = arith.constant 0 : index
    %c0_19 = arith.constant 0 : index
    %26 = vector.load %arg8[%c0_18, %c0_19] : memref<128x128xbf16, #tpu.memory_space<vmem>>, vector<128x128xbf16>
    %cst_20 = arith.constant dense<0.000000e+00> : vector<8x128xf32>
    %27 = tpu.matmul %25, %26, %cst_20 {dimension_numbers = #tpu.dot_dimension_numbers<[1], [0], [0], [1], [0, 0, 1, 1], [], []>} : vector<8x128xbf16>, vector<128x128xbf16>, vector<8x128xf32> -> vector<8x128xf32>
    %c0_21 = arith.constant 0 : index
    %c0_22 = arith.constant 0 : index
    %28 = vector.load %arg9[%c0_21, %c0_22] : memref<1x128xf32, #tpu.memory_space<vmem>>, vector<1x128xf32>
    %29 = vector.broadcast %28 : vector<1x128xf32> to vector<8x128xf32>
    %30 = arith.addf %27, %29 : vector<8x128xf32>
    %cst_23 = arith.constant 0.000000e+00 : f32
    %31 = vector.broadcast %cst_23 : f32 to vector<8x128xf32>
    %32 = arith.maximumf %30, %31 : vector<8x128xf32>
    %33 = arith.truncf %32 : vector<8x128xf32> to vector<8x128xbf16>
    %c0_24 = arith.constant 0 : index
    %c0_25 = arith.constant 0 : index
    %34 = vector.load %arg10[%c0_24, %c0_25] : memref<128x128xbf16, #tpu.memory_space<vmem>>, vector<128x128xbf16>
    %cst_26 = arith.constant dense<0.000000e+00> : vector<8x128xf32>
    %35 = tpu.matmul %33, %34, %cst_26 {dimension_numbers = #tpu.dot_dimension_numbers<[1], [0], [0], [1], [0, 0, 1, 1], [], []>} : vector<8x128xbf16>, vector<128x128xbf16>, vector<8x128xf32> -> vector<8x128xf32>
    %c0_27 = arith.constant 0 : index
    %c0_28 = arith.constant 0 : index
    %36 = vector.load %arg11[%c0_27, %c0_28] : memref<1x128xf32, #tpu.memory_space<vmem>>, vector<1x128xf32>
    %37 = vector.broadcast %36 : vector<1x128xf32> to vector<8x128xf32>
    %38 = arith.addf %35, %37 : vector<8x128xf32>
    %39 = arith.truncf %38 : vector<8x128xf32> to vector<8x128xbf16>
    %c0_29 = arith.constant 0 : index
    %c0_30 = arith.constant 0 : index
    %40 = vector.load %arg12[%c0_29, %c0_30] : memref<8x128xbf16, #tpu.memory_space<vmem>>, vector<8x128xbf16>
    tpu.vector_store %arg12[%c0_29, %c0_30], %39 {strides = array<i32>} : memref<8x128xbf16, #tpu.memory_space<vmem>>, vector<8x128xbf16>,
    return
  }
  func.func @transform_0(%arg0: i32) -> (i32, i32) {
    %c0_i32 = arith.constant 0 : i32
    %c0_i32_0 = arith.constant 0 : i32
    return %arg0, %c0_i32 : i32, i32
  }
  func.func @transform_1(%arg0: i32) -> (i32, i32) {
    %c0_i32 = arith.constant 0 : i32
    %c0_i32_0 = arith.constant 0 : i32
    %c0_i32_1 = arith.constant 0 : i32
    return %c0_i32, %c0_i32_0 : i32, i32
  }
  func.func @transform_2(%arg0: i32) -> (i32, i32) {
    %c0_i32 = arith.constant 0 : i32
    %c0_i32_0 = arith.constant 0 : i32
    %c0_i32_1 = arith.constant 0 : i32
    return %c0_i32, %c0_i32_0 : i32, i32
  }
  func.func @transform_3(%arg0: i32) -> (i32, i32) {
    %c0_i32 = arith.constant 0 : i32
    %c0_i32_0 = arith.constant 0 : i32
    %c0_i32_1 = arith.constant 0 : i32
    return %c0_i32, %c0_i32_0 : i32, i32
  }
  func.func @transform_4(%arg0: i32) -> (i32, i32) {
    %c0_i32 = arith.constant 0 : i32
    %c0_i32_0 = arith.constant 0 : i32
    %c0_i32_1 = arith.constant 0 : i32
    return %c0_i32, %c0_i32_0 : i32, i32
  }
  func.func @transform_5(%arg0: i32) -> (i32, i32) {
    %c0_i32 = arith.constant 0 : i32
    %c0_i32_0 = arith.constant 0 : i32
    %c0_i32_1 = arith.constant 0 : i32
    return %c0_i32, %c0_i32_0 : i32, i32
  }
  func.func @transform_6(%arg0: i32) -> (i32, i32) {
    %c0_i32 = arith.constant 0 : i32
    %c0_i32_0 = arith.constant 0 : i32
    %c0_i32_1 = arith.constant 0 : i32
    return %c0_i32, %c0_i32_0 : i32, i32
  }
  func.func @transform_7(%arg0: i32) -> (i32, i32) {
    %c0_i32 = arith.constant 0 : i32
    %c0_i32_0 = arith.constant 0 : i32
    %c0_i32_1 = arith.constant 0 : i32
    return %c0_i32, %c0_i32_0 : i32, i32
  }
  func.func @transform_8(%arg0: i32) -> (i32, i32) {
    %c0_i32 = arith.constant 0 : i32
    %c0_i32_0 = arith.constant 0 : i32
    %c0_i32_1 = arith.constant 0 : i32
    return %c0_i32, %c0_i32_0 : i32, i32
  }
  func.func @transform_9(%arg0: i32) -> (i32, i32) {
    %c0_i32 = arith.constant 0 : i32
    %c0_i32_0 = arith.constant 0 : i32
    %c0_i32_1 = arith.constant 0 : i32
    return %c0_i32, %c0_i32_0 : i32, i32
  }
  func.func @transform_10(%arg0: i32) -> (i32, i32) {
    %c0_i32 = arith.constant 0 : i32
    %c0_i32_0 = arith.constant 0 : i32
    %c0_i32_1 = arith.constant 0 : i32
    return %c0_i32, %c0_i32_0 : i32, i32
  }
  func.func @transform_11(%arg0: i32) -> (i32, i32) {
    %c0_i32 = arith.constant 0 : i32
    %c0_i32_0 = arith.constant 0 : i32
    return %arg0, %c0_i32 : i32, i32
  }
}

module attributes {stable_mosaic.version = 11 : i64} {
  func.func @_mlp_kernel(%arg0: i32, %arg1: memref<8x32xf32, #tpu.memory_space<vmem>>, %arg2: memref<32x256xbf16, #tpu.memory_space<vmem>>, %arg3: memref<1x256xf32, #tpu.memory_space<vmem>>, %arg4: memref<256x128xbf16, #tpu.memory_space<vmem>>, %arg5: memref<1x128xf32, #tpu.memory_space<vmem>>, %arg6: memref<128x128xbf16, #tpu.memory_space<vmem>>, %arg7: memref<1x128xf32, #tpu.memory_space<vmem>>, %arg8: memref<128x128xbf16, #tpu.memory_space<vmem>>, %arg9: memref<1x128xf32, #tpu.memory_space<vmem>>, %arg10: memref<128x128xbf16, #tpu.memory_space<vmem>>, %arg11: memref<1x128xf32, #tpu.memory_space<vmem>>, %arg12: memref<8x128xbf16, #tpu.memory_space<vmem>>) attributes {dimension_semantics = [#tpu.dimension_semantics<parallel>], iteration_bounds = array<i64: 1>, scalar_prefetch = 0 : i64, scratch_operands = 0 : i64, tpu.core_type = #tpu.core_type<tc>, window_params = [{transform_indices = @transform_0, window_bounds = array<i64: 8, 32>}, {pipeline_mode = #tpu.pipeline_mode<synchronous>, transform_indices = @transform_1, window_bounds = array<i64: 32, 256>}, {pipeline_mode = #tpu.pipeline_mode<synchronous>, transform_indices = @transform_2, window_bounds = array<i64: 1, 256>}, {pipeline_mode = #tpu.pipeline_mode<synchronous>, transform_indices = @transform_3, window_bounds = array<i64: 256, 128>}, {pipeline_mode = #tpu.pipeline_mode<synchronous>, transform_indices = @transform_4, window_bounds = array<i64: 1, 128>}, {pipeline_mode = #tpu.pipeline_mode<synchronous>, transform_indices = @transform_5, window_bounds = array<i64: 128, 128>}, {pipeline_mode = #tpu.pipeline_mode<synchronous>, transform_indices = @transform_6, window_bounds = array<i64: 1, 128>}, {pipeline_mode = #tpu.pipeline_mode<synchronous>, transform_indices = @transform_7, window_bounds = array<i64: 128, 128>}, {pipeline_mode = #tpu.pipeline_mode<synchronous>, transform_indices = @transform_8, window_bounds = array<i64: 1, 128>}, {pipeline_mode = #tpu.pipeline_mode<synchronous>, transform_indices = @transform_9, window_bounds = array<i64: 128, 128>}, {pipeline_mode = #tpu.pipeline_mode<synchronous>, transform_indices = @transform_10, window_bounds = array<i64: 1, 128>}, {transform_indices = @transform_11, window_bounds = array<i64: 8, 128>}]} {
    %c0 = arith.constant 0 : index
    %c0_0 = arith.constant 0 : index
    %0 = vector.load %arg1[%c0, %c0_0] : memref<8x32xf32, #tpu.memory_space<vmem>>, vector<8x32xf32>
    %1 = arith.truncf %0 : vector<8x32xf32> to vector<8x32xbf16>
    %c0_1 = arith.constant 0 : index
    %c0_2 = arith.constant 0 : index
    %2 = vector.load %arg2[%c0_1, %c0_2] : memref<32x256xbf16, #tpu.memory_space<vmem>>, vector<32x256xbf16>
    %cst = arith.constant dense<0.000000e+00> : vector<8x256xf32>
    %3 = tpu.matmul %1, %2, %cst {dimension_numbers = #tpu.dot_dimension_numbers<[1], [0], [0], [1], [0, 0, 1, 1], [], []>} : vector<8x32xbf16>, vector<32x256xbf16>, vector<8x256xf32> -> vector<8x256xf32>
    %c0_3 = arith.constant 0 : index
    %c0_4 = arith.constant 0 : index
    %4 = vector.load %arg3[%c0_3, %c0_4] : memref<1x256xf32, #tpu.memory_space<vmem>>, vector<1x256xf32>
    %5 = vector.broadcast %4 : vector<1x256xf32> to vector<8x256xf32>
    %6 = arith.addf %3, %5 : vector<8x256xf32>
    %cst_5 = arith.constant 0.000000e+00 : f32
    %7 = vector.broadcast %cst_5 : f32 to vector<8x256xf32>
    %8 = arith.maximumf %6, %7 : vector<8x256xf32>
    %9 = arith.truncf %8 : vector<8x256xf32> to vector<8x256xbf16>
    %c0_6 = arith.constant 0 : index
    %c0_7 = arith.constant 0 : index
    %10 = vector.load %arg4[%c0_6, %c0_7] : memref<256x128xbf16, #tpu.memory_space<vmem>>, vector<256x128xbf16>
    %cst_8 = arith.constant dense<0.000000e+00> : vector<8x128xf32>
    %11 = tpu.matmul %9, %10, %cst_8 {dimension_numbers = #tpu.dot_dimension_numbers<[1], [0], [0], [1], [0, 0, 1, 1], [], []>} : vector<8x256xbf16>, vector<256x128xbf16>, vector<8x128xf32> -> vector<8x128xf32>
    %c0_9 = arith.constant 0 : index
    %c0_10 = arith.constant 0 : index
    %12 = vector.load %arg5[%c0_9, %c0_10] : memref<1x128xf32, #tpu.memory_space<vmem>>, vector<1x128xf32>
    %13 = vector.broadcast %12 : vector<1x128xf32> to vector<8x128xf32>
    %14 = arith.addf %11, %13 : vector<8x128xf32>
    %cst_11 = arith.constant 0.000000e+00 : f32
    %15 = vector.broadcast %cst_11 : f32 to vector<8x128xf32>
    %16 = arith.maximumf %14, %15 : vector<8x128xf32>
    %17 = arith.truncf %16 : vector<8x128xf32> to vector<8x128xbf16>
    %c0_12 = arith.constant 0 : index
    %c0_13 = arith.constant 0 : index
    %18 = vector.load %arg6[%c0_12, %c0_13] : memref<128x128xbf16, #tpu.memory_space<vmem>>, vector<128x128xbf16>
    %cst_14 = arith.constant dense<0.000000e+00> : vector<8x128xf32>
    %19 = tpu.matmul %17, %18, %cst_14 {dimension_numbers = #tpu.dot_dimension_numbers<[1], [0], [0], [1], [0, 0, 1, 1], [], []>} : vector<8x128xbf16>, vector<128x128xbf16>, vector<8x128xf32> -> vector<8x128xf32>
    %c0_15 = arith.constant 0 : index
    %c0_16 = arith.constant 0 : index
    %20 = vector.load %arg7[%c0_15, %c0_16] : memref<1x128xf32, #tpu.memory_space<vmem>>, vector<1x128xf32>
    %21 = vector.broadcast %20 : vector<1x128xf32> to vector<8x128xf32>
    %22 = arith.addf %19, %21 : vector<8x128xf32>
    %cst_17 = arith.constant 0.000000e+00 : f32
    %23 = vector.broadcast %cst_17 : f32 to vector<8x128xf32>
    %24 = arith.maximumf %22, %23 : vector<8x128xf32>
    %25 = arith.truncf %24 : vector<8x128xf32> to vector<8x128xbf16>
    %c0_18 = arith.constant 0 : index
    %c0_19 = arith.constant 0 : index
    %26 = vector.load %arg8[%c0_18, %c0_19] : memref<128x128xbf16, #tpu.memory_space<vmem>>, vector<128x128xbf16>
    %cst_20 = arith.constant dense<0.000000e+00> : vector<8x128xf32>
    %27 = tpu.matmul %25, %26, %cst_20 {dimension_numbers = #tpu.dot_dimension_numbers<[1], [0], [0], [1], [0, 0, 1, 1], [], []>} : vector<8x128xbf16>, vector<128x128xbf16>, vector<8x128xf32> -> vector<8x128xf32>
    %c0_21 = arith.constant 0 : index
    %c0_22 = arith.constant 0 : index
    %28 = vector.load %arg9[%c0_21, %c0_22] : memref<1x128xf32, #tpu.memory_space<vmem>>, vector<1x128xf32>
    %29 = vector.broadcast %28 : vector<1x128xf32> to vector<8x128xf32>
    %30 = arith.addf %27, %29 : vector<8x128xf32>
    %cst_23 = arith.constant 0.000000e+00 : f32
    %31 = vector.broadcast %cst_23 : f32 to vector<8x128xf32>
    %32 = arith.maximumf %30, %31 : vector<8x128xf32>
    %33 = arith.truncf %32 : vector<8x128xf32> to vector<8x128xbf16>
    %c0_24 = arith.constant 0 : index
    %c0_25 = arith.constant 0 : index
    %34 = vector.load %arg10[%c0_24, %c0_25] : memref<128x128xbf16, #tpu.memory_space<vmem>>, vector<128x128xbf16>
    %cst_26 = arith.constant dense<0.000000e+00> : vector<8x128xf32>
    %35 = tpu.matmul %33, %34, %cst_26 {dimension_numbers = #tpu.dot_dimension_numbers<[1], [0], [0], [1], [0, 0, 1, 1], [], []>} : vector<8x128xbf16>, vector<128x128xbf16>, vector<8x128xf32> -> vector<8x128xf32>
    %c0_27 = arith.constant 0 : index
    %c0_28 = arith.constant 0 : index
    %36 = vector.load %arg11[%c0_27, %c0_28] : memref<1x128xf32, #tpu.memory_space<vmem>>, vector<1x128xf32>
    %37 = vector.broadcast %36 : vector<1x128xf32> to vector<8x128xf32>
    %38 = arith.addf %35, %37 : vector<8x128xf32>
    %39 = arith.truncf %38 : vector<8x128xf32> to vector<8x128xbf16>
    %c0_29 = arith.constant 0 : index
    %c0_30 = arith.constant 0 : index
    %40 = vector.load %arg12[%c0_29, %c0_30] : memref<8x128xbf16, #tpu.memory_space<vmem>>, vector<8x128xbf16>
    tpu.vector_store %arg12[%c0_29, %c0_30], %39 {strides = array<i32>} : memref<8x128xbf16, #tpu.memory_space<vmem>>, vector<8x128xbf16>,
    return
  }
  func.func @transform_0(%arg0: i32) -> (i32, i32) {
    %c0_i32 = arith.constant 0 : i32
    %c0_i32_0 = arith.constant 0 : i32
    return %arg0, %c0_i32 : i32, i32
  }
  func.func @transform_1(%arg0: i32) -> (i32, i32) {
    %c0_i32 = arith.constant 0 : i32
    %c0_i32_0 = arith.constant 0 : i32
    %c0_i32_1 = arith.constant 0 : i32
    return %c0_i32, %c0_i32_0 : i32, i32
  }
  func.func @transform_2(%arg0: i32) -> (i32, i32) {
    %c0_i32 = arith.constant 0 : i32
    %c0_i32_0 = arith.constant 0 : i32
    %c0_i32_1 = arith.constant 0 : i32
    return %c0_i32, %c0_i32_0 : i32, i32
  }
  func.func @transform_3(%arg0: i32) -> (i32, i32) {
    %c0_i32 = arith.constant 0 : i32
    %c0_i32_0 = arith.constant 0 : i32
    %c0_i32_1 = arith.constant 0 : i32
    return %c0_i32, %c0_i32_0 : i32, i32
  }
  func.func @transform_4(%arg0: i32) -> (i32, i32) {
    %c0_i32 = arith.constant 0 : i32
    %c0_i32_0 = arith.constant 0 : i32
    %c0_i32_1 = arith.constant 0 : i32
    return %c0_i32, %c0_i32_0 : i32, i32
  }
  func.func @transform_5(%arg0: i32) -> (i32, i32) {
    %c0_i32 = arith.constant 0 : i32
    %c0_i32_0 = arith.constant 0 : i32
    %c0_i32_1 = arith.constant 0 : i32
    return %c0_i32, %c0_i32_0 : i32, i32
  }
  func.func @transform_6(%arg0: i32) -> (i32, i32) {
    %c0_i32 = arith.constant 0 : i32
    %c0_i32_0 = arith.constant 0 : i32
    %c0_i32_1 = arith.constant 0 : i32
    return %c0_i32, %c0_i32_0 : i32, i32
  }
  func.func @transform_7(%arg0: i32) -> (i32, i32) {
    %c0_i32 = arith.constant 0 : i32
    %c0_i32_0 = arith.constant 0 : i32
    %c0_i32_1 = arith.constant 0 : i32
    return %c0_i32, %c0_i32_0 : i32, i32
  }
  func.func @transform_8(%arg0: i32) -> (i32, i32) {
    %c0_i32 = arith.constant 0 : i32
    %c0_i32_0 = arith.constant 0 : i32
    %c0_i32_1 = arith.constant 0 : i32
    return %c0_i32, %c0_i32_0 : i32, i32
  }
  func.func @transform_9(%arg0: i32) -> (i32, i32) {
    %c0_i32 = arith.constant 0 : i32
    %c0_i32_0 = arith.constant 0 : i32
    %c0_i32_1 = arith.constant 0 : i32
    return %c0_i32, %c0_i32_0 : i32, i32
  }
  func.func @transform_10(%arg0: i32) -> (i32, i32) {
    %c0_i32 = arith.constant 0 : i32
    %c0_i32_0 = arith.constant 0 : i32
    %c0_i32_1 = arith.constant 0 : i32
    return %c0_i32, %c0_i32_0 : i32, i32
  }
  func.func @transform_11(%arg0: i32) -> (i32, i32) {
    %c0_i32 = arith.constant 0 : i32
    %c0_i32_0 = arith.constant 0 : i32
    return %arg0, %c0_i32 : i32, i32
  }
}

</mosaic_0001>

<llo_original>
// kernel: tpu_custom_call.1
$region0: #{tpu_custom_call.1}
  #allocation0 [shape = 'u32[]', space=smem, size = 0x4, offset = 0x4, fixed_abs, tag = 'smem constant byte address 0x4 - core index']
  #allocation1 [shape = 'u32[144,128]{1,0:T(1,128)}', space=vmem, size = 0x12000, scoped, tag = 'internal scratch']
  %s0 = inlined_call_operand.hbm [shape: f32[8,32], index: 0, kind: input, shape index: {}]
  %s1 = inlined_call_operand.hbm [shape: bf16[32,256], index: 1, kind: input, shape index: {}]
  %s2 = inlined_call_operand.vmem [shape: f32[1,256], index: 2, kind: input, shape index: {}]
  %s3 = inlined_call_operand.hbm [shape: bf16[256,128], index: 3, kind: input, shape index: {}]
  %s4 = inlined_call_operand.vmem [shape: f32[1,128], index: 4, kind: input, shape index: {}]
  %s5 = inlined_call_operand.hbm [shape: bf16[128,128], index: 5, kind: input, shape index: {}]
  %s6 = inlined_call_operand.vmem [shape: f32[1,128], index: 6, kind: input, shape index: {}]
  %s7 = inlined_call_operand.hbm [shape: bf16[128,128], index: 7, kind: input, shape index: {}]
  %s8 = inlined_call_operand.vmem [shape: f32[1,128], index: 8, kind: input, shape index: {}]
  %s9 = inlined_call_operand.hbm [shape: bf16[128,128], index: 9, kind: input, shape index: {}]
  %s10 = inlined_call_operand.vmem [shape: f32[1,128], index: 10, kind: input, shape index: {}]
  %s11 = inlined_call_operand.hbm [shape: bf16[8,128], index: 11, kind: output, shape index: {}]
  %s12 = sld [smem:[#allocation0]]
  $region78: #{tpu_custom_call.1} parent=0
    _
  %s14 = ssub.s32 1, %s12
  %s15 = scalar_select 0, %s14, %s12
  $region1: #{tpu_custom_call.1} parent=0
    #allocation2 [shape = 'u8[4096]{0}', space=vmem, size = 0x1000, scoped, tag = 'input window, operand 0, single buffered']
    #allocation3 [shape = 's32[1]{0}', space=sflag, size = 0x4, scoped, tag = 'scoped memory for tpu_custom_call.1']
    #allocation4 [shape = 's32[1]{0}', space=sflag, size = 0x4, scoped, tag = 'scoped memory for tpu_custom_call.1']
    #allocation5 [shape = 'u8[16384]{0}', space=vmem, size = 0x4000, scoped, tag = 'input window, operand 1, single buffered']
    #allocation6 [shape = 's32[1]{0}', space=sflag, size = 0x4, scoped, tag = 'scoped memory for tpu_custom_call.1']
    #allocation7 [shape = 'u8[65536]{0}', space=vmem, size = 0x10000, scoped, tag = 'input window, operand 3, single buffered']
    #allocation8 [shape = 'u8[32768]{0}', space=vmem, size = 0x8000, scoped, tag = 'input window, operand 5, single buffered']
    #allocation9 [shape = 's32[1]{0}', space=sflag, size = 0x4, scoped, tag = 'scoped memory for tpu_custom_call.1']
    #allocation10 [shape = 'u8[32768]{0}', space=vmem, size = 0x8000, scoped, tag = 'input window, operand 7, single buffered']
    #allocation11 [shape = 'u8[32768]{0}', space=vmem, size = 0x8000, scoped, tag = 'input window, operand 9, single buffered']
    #allocation12 [shape = 's32[1]{0}', space=sflag, size = 0x4, scoped, tag = 'scoped memory for tpu_custom_call.1']
    #allocation13 [shape = 'u8[2048]{0}', space=vmem, size = 0x800, scoped, tag = 'output window, operand 0, single buffered']
    %16 = vsyncpa [#allocation3], 0
    %17 = vsyncpa [#allocation6], 0
    %18 = vsyncpa [#allocation9], 0
    %19 = vsyncpa [#allocation12], 0
    %20 = vsyncpa [#allocation4], 0
    // Predicated region
    $region2: #{tpu_custom_call.1} parent=1 // pred_check
      _
    $region3: #{tpu_custom_call.1} parent=1 // pred_check_branch
      %22 = sbr.rel (0) target = $region5
    $region4: #{tpu_custom_call.1} parent=1 // pred_region
      %s24 = ssub.s32 128, 128
      %25 = vsyncadd [#allocation3], %s24
      %s27 = sshll.u32 [#allocation2], 4
      %s28 = int_to_ptr.vmem [resolvable:$true] %s27
      %30 = dma.hbm_to_vmem [thread:$0]  %s0, 128, %s28, [#allocation3]
    $region5: #{tpu_custom_call.1} parent=1 // pred_fallthru
      _
    // Predicated region
    $region6: #{tpu_custom_call.1} parent=1 // pred_check
      _
    $region7: #{tpu_custom_call.1} parent=1 // pred_check_branch
      %32 = sbr.rel (0) target = $region9
    $region8: #{tpu_custom_call.1} parent=1 // pred_region
      %s34 = ssub.s32 512, 512
      %35 = vsyncadd [#allocation6], %s34
      %s36 = sshll.u32 [#allocation5], 4
      %s37 = int_to_ptr.vmem [resolvable:$true] %s36
      %42 = dma.hbm_to_vmem [thread:$0]  %s1, 512, %s37, [#allocation6], 128, 128, 8
    $region9: #{tpu_custom_call.1} parent=1 // pred_fallthru
      _
    // Predicated region
    $region10: #{tpu_custom_call.1} parent=1 // pred_check
      _
    $region11: #{tpu_custom_call.1} parent=1 // pred_check_branch
      %44 = sbr.rel (0) target = $region13
    $region12: #{tpu_custom_call.1} parent=1 // pred_region
      _
    $region13: #{tpu_custom_call.1} parent=1 // pred_fallthru
      _
    // Predicated region
    $region14: #{tpu_custom_call.1} parent=1 // pred_check
      _
    $region15: #{tpu_custom_call.1} parent=1 // pred_check_branch
      %46 = sbr.rel (0) target = $region17
    $region16: #{tpu_custom_call.1} parent=1 // pred_region
      %s48 = ssub.s32 2048, 2048
      %49 = vsyncadd [#allocation6], %s48
      %s50 = sshll.u32 [#allocation7], 4
      %s51 = int_to_ptr.vmem [resolvable:$true] %s50
      %56 = dma.hbm_to_vmem [thread:$0]  %s3, 2048, %s51, [#allocation6], 64, 64, 4
    $region17: #{tpu_custom_call.1} parent=1 // pred_fallthru
      _
    // Predicated region
    $region18: #{tpu_custom_call.1} parent=1 // pred_check
      _
    $region19: #{tpu_custom_call.1} parent=1 // pred_check_branch
      %58 = sbr.rel (0) target = $region21
    $region20: #{tpu_custom_call.1} parent=1 // pred_region
      _
    $region21: #{tpu_custom_call.1} parent=1 // pred_fallthru
      _
    // Predicated region
    $region22: #{tpu_custom_call.1} parent=1 // pred_check
      _
    $region23: #{tpu_custom_call.1} parent=1 // pred_check_branch
      %60 = sbr.rel (0) target = $region25
    $region24: #{tpu_custom_call.1} parent=1 // pred_region
      %s62 = ssub.s32 1024, 1024
      %63 = vsyncadd [#allocation9], %s62
      %s64 = sshll.u32 [#allocation8], 4
      %s65 = int_to_ptr.vmem [resolvable:$true] %s64
      %70 = dma.hbm_to_vmem [thread:$0]  %s5, 1024, %s65, [#allocation9], 64, 64, 4
    $region25: #{tpu_custom_call.1} parent=1 // pred_fallthru
      _
    // Predicated region
    $region26: #{tpu_custom_call.1} parent=1 // pred_check
      _
    $region27: #{tpu_custom_call.1} parent=1 // pred_check_branch
      %72 = sbr.rel (0) target = $region29
    $region28: #{tpu_custom_call.1} parent=1 // pred_region
      _
    $region29: #{tpu_custom_call.1} parent=1 // pred_fallthru
      _
    // Predicated region
    $region30: #{tpu_custom_call.1} parent=1 // pred_check
      _
    $region31: #{tpu_custom_call.1} parent=1 // pred_check_branch
      %74 = sbr.rel (0) target = $region33
    $region32: #{tpu_custom_call.1} parent=1 // pred_region
      %s76 = ssub.s32 1024, 1024
      %77 = vsyncadd [#allocation9], %s76
      %s78 = sshll.u32 [#allocation10], 4
      %s79 = int_to_ptr.vmem [resolvable:$true] %s78
      %84 = dma.hbm_to_vmem [thread:$0]  %s7, 1024, %s79, [#allocation9], 64, 64, 4
    $region33: #{tpu_custom_call.1} parent=1 // pred_fallthru
      _
    // Predicated region
    $region34: #{tpu_custom_call.1} parent=1 // pred_check
      _
    $region35: #{tpu_custom_call.1} parent=1 // pred_check_branch
      %86 = sbr.rel (0) target = $region37
    $region36: #{tpu_custom_call.1} parent=1 // pred_region
      _
    $region37: #{tpu_custom_call.1} parent=1 // pred_fallthru
      _
    // Predicated region
    $region38: #{tpu_custom_call.1} parent=1 // pred_check
      _
    $region39: #{tpu_custom_call.1} parent=1 // pred_check_branch
      %88 = sbr.rel (0) target = $region41
    $region40: #{tpu_custom_call.1} parent=1 // pred_region
      %s90 = ssub.s32 1024, 1024
      %91 = vsyncadd [#allocation12], %s90
      %s92 = sshll.u32 [#allocation11], 4
      %s93 = int_to_ptr.vmem [resolvable:$true] %s92
      %98 = dma.hbm_to_vmem [thread:$0]  %s9, 1024, %s93, [#allocation12], 64, 64, 4
    $region41: #{tpu_custom_call.1} parent=1 // pred_fallthru
      _
    // Predicated region
    $region42: #{tpu_custom_call.1} parent=1 // pred_check
      _
    $region43: #{tpu_custom_call.1} parent=1 // pred_check_branch
      %100 = sbr.rel (0) target = $region45
    $region44: #{tpu_custom_call.1} parent=1 // pred_region
      _
    $region45: #{tpu_custom_call.1} parent=1 // pred_fallthru
      _
    // Predicated region
    $region46: #{tpu_custom_call.1} parent=1 // pred_check
      _
    $region47: #{tpu_custom_call.1} parent=1 // pred_check_branch
      %102 = sbr.rel (0) target = $region49
    $region48: #{tpu_custom_call.1} parent=1 // pred_region
      %103 = dma.done [#allocation3], 128
    $region49: #{tpu_custom_call.1} parent=1 // pred_fallthru
      _
    // Predicated region
    $region50: #{tpu_custom_call.1} parent=1 // pred_check
      _
    $region51: #{tpu_custom_call.1} parent=1 // pred_check_branch
      %105 = sbr.rel (0) target = $region53
    $region52: #{tpu_custom_call.1} parent=1 // pred_region
      %106 = dma.done [#allocation6], 512
    $region53: #{tpu_custom_call.1} parent=1 // pred_fallthru
      _
    // Predicated region
    $region54: #{tpu_custom_call.1} parent=1 // pred_check
      _
    $region55: #{tpu_custom_call.1} parent=1 // pred_check_branch
      %108 = sbr.rel (0) target = $region57
    $region56: #{tpu_custom_call.1} parent=1 // pred_region
      %109 = dma.done [#allocation6], 2048
    $region57: #{tpu_custom_call.1} parent=1 // pred_fallthru
      _
    // Predicated region
    $region58: #{tpu_custom_call.1} parent=1 // pred_check
      _
    $region59: #{tpu_custom_call.1} parent=1 // pred_check_branch
      %111 = sbr.rel (0) target = $region61
    $region60: #{tpu_custom_call.1} parent=1 // pred_region
      %112 = dma.done [#allocation9], 1024
    $region61: #{tpu_custom_call.1} parent=1 // pred_fallthru
      _
    // Predicated region
    $region62: #{tpu_custom_call.1} parent=1 // pred_check
      _
    $region63: #{tpu_custom_call.1} parent=1 // pred_check_branch
      %114 = sbr.rel (0) target = $region65
    $region64: #{tpu_custom_call.1} parent=1 // pred_region
      %115 = dma.done [#allocation9], 1024
    $region65: #{tpu_custom_call.1} parent=1 // pred_fallthru
      _
    // Predicated region
    $region66: #{tpu_custom_call.1} parent=1 // pred_check
      _
    $region67: #{tpu_custom_call.1} parent=1 // pred_check_branch
      %117 = sbr.rel (0) target = $region69
    $region68: #{tpu_custom_call.1} parent=1 // pred_region
      %118 = dma.done [#allocation12], 1024
    $region69: #{tpu_custom_call.1} parent=1 // pred_fallthru
      _
    %v120 = vld [vmem:[#allocation2] sm:$0xff]
    %v121 = vpack.c.bf16 %v120, %v120
    %v122 = vld [vmem:[#allocation5] sm:$0xff]
    %v123 = vld [vmem:[#allocation5 + $0x8] sm:$0xff]
    %v124 = vld [vmem:[#allocation5 + $0x10] sm:$0xff]
    %v125 = vld [vmem:[#allocation5 + $0x18] sm:$0xff]
    %v126 = vld [vmem:[%s2] sm:$0x3]
    %v128 = vlaneseq
    %v129 = vshrl.u32 %v128, 7
    %v130 = vsub.s32 0, %v129
    %v131 = vrot.slane %v126, %v130
    %v132 = vlaneseq
    %v133 = vshrl.u32 %v132, 7
    %v134 = vsub.s32 1, %v133
    %v135 = vrot.slane %v126, %v134
    %v142 = vunpack.c.l.b16 %v122
    %v143 = vunpack.c.h.b16 %v122
    %v144 = vunpack.c.l.b16 %v123
    %v145 = vunpack.c.h.b16 %v123
    %v146 = vunpack.c.l.b16 %v124
    %v147 = vunpack.c.h.b16 %v124
    %v148 = vunpack.c.l.b16 %v125
    %v149 = vunpack.c.h.b16 %v125
    %v150 = vpack.c.b16 %v144, %v142
    %v151 = vpack.c.b16 %v145, %v143
    %v152 = vpack.c.b16 %v148, %v146
    %v153 = vpack.c.b16 %v149, %v147
    %vm158 = vcmask 261120
    %v160 = vsel %vm158, %v121, 0
    %162 = vmatprep.subr.bf16.mxu0 %v151
    %163 = vmatpush1.bf16.msra.mxu0 %v150
    %164 = vmatprep.subr.bf16.mxu0 %v153
    %165 = vmatpush1.bf16.msra.mxu0 %v152
    %166 = vmatprep.subr.bf16.mxu0 0
    %167 = vmatpush1.bf16.msra.mxu0 0
    %168 = vmatprep.subr.bf16.mxu0 0
    %169 = vmatpush1.bf16.msra.mxu0 0
    %170 = vmatprep.subr.bf16.mxu0 0
    %171 = vmatpush1.bf16.msra.mxu0 0
    %172 = vmatprep.subr.bf16.mxu0 0
    %173 = vmatpush1.bf16.msra.mxu0 0
    %174 = vmatprep.subr.bf16.mxu0 0
    %175 = vmatpush1.bf16.msra.mxu0 0
    %176 = vmatprep.subr.bf16.mxu0 0
    %177 = vmatpush1.bf16.msra.mxu0 0
    %178 = vmatprep.subr.bf16.mxu0 0
    %179 = vmatpush1.bf16.msra.mxu0 0
    %180 = vmatprep.subr.bf16.mxu0 0
    %181 = vmatpush1.bf16.msra.mxu0 0
    %182 = vmatprep.subr.bf16.mxu0 0
    %183 = vmatpush1.bf16.msra.mxu0 0
    %184 = vmatprep.subr.bf16.mxu0 0
    %185 = vmatpush1.bf16.msra.mxu0 0
    %186 = vmatprep.subr.bf16.mxu0 0
    %187 = vmatpush1.bf16.msra.mxu0 0
    %188 = vmatprep.subr.bf16.mxu0 0
    %189 = vmatpush1.bf16.msra.mxu0 0
    %190 = vmatprep.subr.bf16.mxu0 0
    %191 = vmatpush1.bf16.msra.mxu0 0
    %192 = vmatprep.subr.bf16.mxu0 0
    %193 = vmatpush1.bf16.msra.mxu0 0
    %194 = vmatprep.mubr.bf16.mxu0 0
    %195 = vmatmul.mubr.bf16.gmra.mrb[0].mxu0 %v160
    %v196 = vpop.f32.mrb[0].mxu0
    %v197 = vadd.f32 %v131, %v196
    %v198 = vpop.f32.mrb[0].mxu0
    %v199 = vadd.f32 %v135, %v198
    %v200 = vpop.f32.mrb[0].mxu0
    %v201 = vpop.f32.mrb[0].mxu0
    %202 = vdwg.mxu0
    %v203 = vmax.f32 %v197, 0.0
    %v204 = vmax.f32 %v199, 0.0
    %v205 = vpack.c.bf16 %v203, %v203
    %v206 = vpack.c.bf16 %v204, %v204
    %v207 = vld [vmem:[#allocation7] sm:$0xf]
    %v208 = vld [vmem:[#allocation7 + $0x4] sm:$0xf]
    %v209 = vld [vmem:[#allocation7 + $0x8] sm:$0xf]
    %v210 = vld [vmem:[#allocation7 + $0xc] sm:$0xf]
    %v211 = vld [vmem:[#allocation7 + $0x10] sm:$0xf]
    %v212 = vld [vmem:[#allocation7 + $0x14] sm:$0xf]
    %v213 = vld [vmem:[#allocation7 + $0x18] sm:$0xf]
    %v214 = vld [vmem:[#allocation7 + $0x1c] sm:$0xf]
    %v215 = vld [vmem:[#allocation7 + $0x20] sm:$0xf]
    %v216 = vld [vmem:[#allocation7 + $0x24] sm:$0xf]
    %v217 = vld [vmem:[#allocation7 + $0x28] sm:$0xf]
    %v218 = vld [vmem:[#allocation7 + $0x2c] sm:$0xf]
    %v219 = vld [vmem:[#allocation7 + $0x30] sm:$0xf]
    %v220 = vld [vmem:[#allocation7 + $0x34] sm:$0xf]
    %v221 = vld [vmem:[#allocation7 + $0x38] sm:$0xf]
    %v222 = vld [vmem:[#allocation7 + $0x3c] sm:$0xf]
    %v223 = vld [vmem:[#allocation7 + $0x40] sm:$0xf]
    %v224 = vld [vmem:[#allocation7 + $0x44] sm:$0xf]
    %v225 = vld [vmem:[#allocation7 + $0x48] sm:$0xf]
    %v226 = vld [vmem:[#allocation7 + $0x4c] sm:$0xf]
    %v227 = vld [vmem:[#allocation7 + $0x50] sm:$0xf]
    %v228 = vld [vmem:[#allocation7 + $0x54] sm:$0xf]
    %v229 = vld [vmem:[#allocation7 + $0x58] sm:$0xf]
    %v230 = vld [vmem:[#allocation7 + $0x5c] sm:$0xf]
    %v231 = vld [vmem:[#allocation7 + $0x60] sm:$0xf]
    %v232 = vld [vmem:[#allocation7 + $0x64] sm:$0xf]
    %v233 = vld [vmem:[#allocation7 + $0x68] sm:$0xf]
    %v234 = vld [vmem:[#allocation7 + $0x6c] sm:$0xf]
    %v235 = vld [vmem:[#allocation7 + $0x70] sm:$0xf]
    %v236 = vld [vmem:[#allocation7 + $0x74] sm:$0xf]
    %v237 = vld [vmem:[#allocation7 + $0x78] sm:$0xf]
    %v238 = vld [vmem:[#allocation7 + $0x7c] sm:$0xf]
    %v239 = vld [vmem:[%s4] sm:$0x1]
    %v241 = vlaneseq
    %v242 = vshrl.u32 %v241, 7
    %v243 = vsub.s32 0, %v242
    %v244 = vrot.slane %v239, %v243
    %v278 = vunpack.c.l.b16 %v207
    %v279 = vunpack.c.l.b16 %v208
    %v280 = vunpack.c.l.b16 %v209
    %v281 = vunpack.c.l.b16 %v210
    %v282 = vunpack.c.l.b16 %v211
    %v283 = vunpack.c.l.b16 %v212
    %v284 = vunpack.c.l.b16 %v213
    %v285 = vunpack.c.l.b16 %v214
    %v286 = vunpack.c.l.b16 %v215
    %v287 = vunpack.c.l.b16 %v216
    %v288 = vunpack.c.l.b16 %v217
    %v289 = vunpack.c.l.b16 %v218
    %v290 = vunpack.c.l.b16 %v219
    %v291 = vunpack.c.l.b16 %v220
    %v292 = vunpack.c.l.b16 %v221
    %v293 = vunpack.c.l.b16 %v222
    %v294 = vunpack.c.l.b16 %v223
    %v295 = vunpack.c.l.b16 %v224
    %v296 = vunpack.c.l.b16 %v225
    %v297 = vunpack.c.l.b16 %v226
    %v298 = vunpack.c.l.b16 %v227
    %v299 = vunpack.c.l.b16 %v228
    %v300 = vunpack.c.l.b16 %v229
    %v301 = vunpack.c.l.b16 %v230
    %v302 = vunpack.c.l.b16 %v231
    %v303 = vunpack.c.l.b16 %v232
    %v304 = vunpack.c.l.b16 %v233
    %v305 = vunpack.c.l.b16 %v234
    %v306 = vunpack.c.l.b16 %v235
    %v307 = vunpack.c.l.b16 %v236
    %v308 = vunpack.c.l.b16 %v237
    %v309 = vunpack.c.l.b16 %v238
    %v310 = vpack.c.b16 %v279, %v278
    %v311 = vpack.c.b16 %v281, %v280
    %v312 = vpack.c.b16 %v283, %v282
    %v313 = vpack.c.b16 %v285, %v284
    %v314 = vpack.c.b16 %v287, %v286
    %v315 = vpack.c.b16 %v289, %v288
    %v316 = vpack.c.b16 %v291, %v290
    %v317 = vpack.c.b16 %v293, %v292
    %v318 = vpack.c.b16 %v295, %v294
    %v319 = vpack.c.b16 %v297, %v296
    %v320 = vpack.c.b16 %v299, %v298
    %v321 = vpack.c.b16 %v301, %v300
    %v322 = vpack.c.b16 %v303, %v302
    %v323 = vpack.c.b16 %v305, %v304
    %v324 = vpack.c.b16 %v307, %v306
    %v325 = vpack.c.b16 %v309, %v308
    %342 = vmatprep.subr.bf16.mxu0 0
    %343 = vmatpush1.bf16.msra.mxu0 %v310
    %344 = vmatprep.subr.bf16.mxu0 0
    %345 = vmatpush1.bf16.msra.mxu0 %v311
    %346 = vmatprep.subr.bf16.mxu0 0
    %347 = vmatpush1.bf16.msra.mxu0 %v312
    %348 = vmatprep.subr.bf16.mxu0 0
    %349 = vmatpush1.bf16.msra.mxu0 %v313
    %350 = vmatprep.subr.bf16.mxu0 0
    %351 = vmatpush1.bf16.msra.mxu0 %v314
    %352 = vmatprep.subr.bf16.mxu0 0
    %353 = vmatpush1.bf16.msra.mxu0 %v315
    %354 = vmatprep.subr.bf16.mxu0 0
    %355 = vmatpush1.bf16.msra.mxu0 %v316
    %356 = vmatprep.subr.bf16.mxu0 0
    %357 = vmatpush1.bf16.msra.mxu0 %v317
    %358 = vmatprep.subr.bf16.mxu0 0
    %359 = vmatpush1.bf16.msra.mxu0 %v318
    %360 = vmatprep.subr.bf16.mxu0 0
    %361 = vmatpush1.bf16.msra.mxu0 %v319
    %362 = vmatprep.subr.bf16.mxu0 0
    %363 = vmatpush1.bf16.msra.mxu0 %v320
    %364 = vmatprep.subr.bf16.mxu0 0
    %365 = vmatpush1.bf16.msra.mxu0 %v321
    %366 = vmatprep.subr.bf16.mxu0 0
    %367 = vmatpush1.bf16.msra.mxu0 %v322
    %368 = vmatprep.subr.bf16.mxu0 0
    %369 = vmatpush1.bf16.msra.mxu0 %v323
    %370 = vmatprep.subr.bf16.mxu0 0
    %371 = vmatpush1.bf16.msra.mxu0 %v324
    %372 = vmatprep.subr.bf16.mxu0 0
    %373 = vmatpush1.bf16.msra.mxu0 %v325
    %374 = vmatprep.mubr.bf16.mxu0 %v206
    %375 = vmatmul.mubr.bf16.gmra.mrb[0].mxu0 %v205
    %v376 = vpop.f32.mrb[0].mxu0
    %v377 = vadd.f32 %v244, %v376
    %v378 = vpop.f32.mrb[0].mxu0
    %v379 = vpop.f32.mrb[0].mxu0
    %v380 = vpop.f32.mrb[0].mxu0
    %381 = vdwg.mxu0
    %v382 = vmax.f32 %v377, 0.0
    %v383 = vpack.c.bf16 %v382, %v382
    %v384 = vld [vmem:[#allocation8] sm:$0xf]
    %v385 = vld [vmem:[#allocation8 + $0x4] sm:$0xf]
    %v386 = vld [vmem:[#allocation8 + $0x8] sm:$0xf]
    %v387 = vld [vmem:[#allocation8 + $0xc] sm:$0xf]
    %v388 = vld [vmem:[#allocation8 + $0x10] sm:$0xf]
    %v389 = vld [vmem:[#allocation8 + $0x14] sm:$0xf]
    %v390 = vld [vmem:[#allocation8 + $0x18] sm:$0xf]
    %v391 = vld [vmem:[#allocation8 + $0x1c] sm:$0xf]
    %v392 = vld [vmem:[#allocation8 + $0x20] sm:$0xf]
    %v393 = vld [vmem:[#allocation8 + $0x24] sm:$0xf]
    %v394 = vld [vmem:[#allocation8 + $0x28] sm:$0xf]
    %v395 = vld [vmem:[#allocation8 + $0x2c] sm:$0xf]
    %v396 = vld [vmem:[#allocation8 + $0x30] sm:$0xf]
    %v397 = vld [vmem:[#allocation8 + $0x34] sm:$0xf]
    %v398 = vld [vmem:[#allocation8 + $0x38] sm:$0xf]
    %v399 = vld [vmem:[#allocation8 + $0x3c] sm:$0xf]
    %v400 = vld [vmem:[%s6] sm:$0x1]
    %v402 = vlaneseq
    %v403 = vshrl.u32 %v402, 7
    %v404 = vsub.s32 0, %v403
    %v405 = vrot.slane %v400, %v404
    %v423 = vunpack.c.l.b16 %v384
    %v424 = vunpack.c.l.b16 %v385
    %v425 = vunpack.c.l.b16 %v386
    %v426 = vunpack.c.l.b16 %v387
    %v427 = vunpack.c.l.b16 %v388
    %v428 = vunpack.c.l.b16 %v389
    %v429 = vunpack.c.l.b16 %v390
    %v430 = vunpack.c.l.b16 %v391
    %v431 = vunpack.c.l.b16 %v392
    %v432 = vunpack.c.l.b16 %v393
    %v433 = vunpack.c.l.b16 %v394
    %v434 = vunpack.c.l.b16 %v395
    %v435 = vunpack.c.l.b16 %v396
    %v436 = vunpack.c.l.b16 %v397
    %v437 = vunpack.c.l.b16 %v398
    %v438 = vunpack.c.l.b16 %v399
    %v439 = vpack.c.b16 %v424, %v423
    %v440 = vpack.c.b16 %v426, %v425
    %v441 = vpack.c.b16 %v428, %v427
    %v442 = vpack.c.b16 %v430, %v429
    %v443 = vpack.c.b16 %v432, %v431
    %v444 = vpack.c.b16 %v434, %v433
    %v445 = vpack.c.b16 %v436, %v435
    %v446 = vpack.c.b16 %v438, %v437
    %455 = vmatprep.subr.bf16.mxu0 0
    %456 = vmatpush1.bf16.msra.mxu0 %v439
    %457 = vmatprep.subr.bf16.mxu0 0
    %458 = vmatpush1.bf16.msra.mxu0 %v440
    %459 = vmatprep.subr.bf16.mxu0 0
    %460 = vmatpush1.bf16.msra.mxu0 %v441
    %461 = vmatprep.subr.bf16.mxu0 0
    %462 = vmatpush1.bf16.msra.mxu0 %v442
    %463 = vmatprep.subr.bf16.mxu0 0
    %464 = vmatpush1.bf16.msra.mxu0 %v443
    %465 = vmatprep.subr.bf16.mxu0 0
    %466 = vmatpush1.bf16.msra.mxu0 %v444
    %467 = vmatprep.subr.bf16.mxu0 0
    %468 = vmatpush1.bf16.msra.mxu0 %v445
    %469 = vmatprep.subr.bf16.mxu0 0
    %470 = vmatpush1.bf16.msra.mxu0 %v446
    %471 = vmatprep.subr.bf16.mxu0 0
    %472 = vmatpush1.bf16.msra.mxu0 0
    %473 = vmatprep.subr.bf16.mxu0 0
    %474 = vmatpush1.bf16.msra.mxu0 0
    %475 = vmatprep.subr.bf16.mxu0 0
    %476 = vmatpush1.bf16.msra.mxu0 0
    %477 = vmatprep.subr.bf16.mxu0 0
    %478 = vmatpush1.bf16.msra.mxu0 0
    %479 = vmatprep.subr.bf16.mxu0 0
    %480 = vmatpush1.bf16.msra.mxu0 0
    %481 = vmatprep.subr.bf16.mxu0 0
    %482 = vmatpush1.bf16.msra.mxu0 0
    %483 = vmatprep.subr.bf16.mxu0 0
    %484 = vmatpush1.bf16.msra.mxu0 0
    %485 = vmatprep.subr.bf16.mxu0 0
    %486 = vmatpush1.bf16.msra.mxu0 0
    %487 = vmatprep.mubr.bf16.mxu0 0
    %488 = vmatmul.mubr.bf16.gmra.mrb[0].mxu0 %v383
    %v489 = vpop.f32.mrb[0].mxu0
    %v490 = vadd.f32 %v405, %v489
    %v491 = vpop.f32.mrb[0].mxu0
    %v492 = vpop.f32.mrb[0].mxu0
    %v493 = vpop.f32.mrb[0].mxu0
    %494 = vdwg.mxu0
    %v495 = vmax.f32 %v490, 0.0
    %v496 = vpack.c.bf16 %v495, %v495
    %v497 = vld [vmem:[#allocation10] sm:$0xf]
    %v498 = vld [vmem:[#allocation10 + $0x4] sm:$0xf]
    %v499 = vld [vmem:[#allocation10 + $0x8] sm:$0xf]
    %v500 = vld [vmem:[#allocation10 + $0xc] sm:$0xf]
    %v501 = vld [vmem:[#allocation10 + $0x10] sm:$0xf]
    %v502 = vld [vmem:[#allocation10 + $0x14] sm:$0xf]
    %v503 = vld [vmem:[#allocation10 + $0x18] sm:$0xf]
    %v504 = vld [vmem:[#allocation10 + $0x1c] sm:$0xf]
    %v505 = vld [vmem:[#allocation10 + $0x20] sm:$0xf]
    %v506 = vld [vmem:[#allocation10 + $0x24] sm:$0xf]
    %v507 = vld [vmem:[#allocation10 + $0x28] sm:$0xf]
    %v508 = vld [vmem:[#allocation10 + $0x2c] sm:$0xf]
    %v509 = vld [vmem:[#allocation10 + $0x30] sm:$0xf]
    %v510 = vld [vmem:[#allocation10 + $0x34] sm:$0xf]
    %v511 = vld [vmem:[#allocation10 + $0x38] sm:$0xf]
    %v512 = vld [vmem:[#allocation10 + $0x3c] sm:$0xf]
    %v513 = vld [vmem:[%s8] sm:$0x1]
    %v515 = vlaneseq
    %v516 = vshrl.u32 %v515, 7
    %v517 = vsub.s32 0, %v516
    %v518 = vrot.slane %v513, %v517
    %v536 = vunpack.c.l.b16 %v497
    %v537 = vunpack.c.l.b16 %v498
    %v538 = vunpack.c.l.b16 %v499
    %v539 = vunpack.c.l.b16 %v500
    %v540 = vunpack.c.l.b16 %v501
    %v541 = vunpack.c.l.b16 %v502
    %v542 = vunpack.c.l.b16 %v503
    %v543 = vunpack.c.l.b16 %v504
    %v544 = vunpack.c.l.b16 %v505
    %v545 = vunpack.c.l.b16 %v506
    %v546 = vunpack.c.l.b16 %v507
    %v547 = vunpack.c.l.b16 %v508
    %v548 = vunpack.c.l.b16 %v509
    %v549 = vunpack.c.l.b16 %v510
    %v550 = vunpack.c.l.b16 %v511
    %v551 = vunpack.c.l.b16 %v512
    %v552 = vpack.c.b16 %v537, %v536
    %v553 = vpack.c.b16 %v539, %v538
    %v554 = vpack.c.b16 %v541, %v540
    %v555 = vpack.c.b16 %v543, %v542
    %v556 = vpack.c.b16 %v545, %v544
    %v557 = vpack.c.b16 %v547, %v546
    %v558 = vpack.c.b16 %v549, %v548
    %v559 = vpack.c.b16 %v551, %v550
    %568 = vmatprep.subr.bf16.mxu0 0
    %569 = vmatpush1.bf16.msra.mxu0 %v552
    %570 = vmatprep.subr.bf16.mxu0 0
    %571 = vmatpush1.bf16.msra.mxu0 %v553
    %572 = vmatprep.subr.bf16.mxu0 0
    %573 = vmatpush1.bf16.msra.mxu0 %v554
    %574 = vmatprep.subr.bf16.mxu0 0
    %575 = vmatpush1.bf16.msra.mxu0 %v555
    %576 = vmatprep.subr.bf16.mxu0 0
    %577 = vmatpush1.bf16.msra.mxu0 %v556
    %578 = vmatprep.subr.bf16.mxu0 0
    %579 = vmatpush1.bf16.msra.mxu0 %v557
    %580 = vmatprep.subr.bf16.mxu0 0
    %581 = vmatpush1.bf16.msra.mxu0 %v558
    %582 = vmatprep.subr.bf16.mxu0 0
    %583 = vmatpush1.bf16.msra.mxu0 %v559
    %584 = vmatprep.subr.bf16.mxu0 0
    %585 = vmatpush1.bf16.msra.mxu0 0
    %586 = vmatprep.subr.bf16.mxu0 0
    %587 = vmatpush1.bf16.msra.mxu0 0
    %588 = vmatprep.subr.bf16.mxu0 0
    %589 = vmatpush1.bf16.msra.mxu0 0
    %590 = vmatprep.subr.bf16.mxu0 0
    %591 = vmatpush1.bf16.msra.mxu0 0
    %592 = vmatprep.subr.bf16.mxu0 0
    %593 = vmatpush1.bf16.msra.mxu0 0
    %594 = vmatprep.subr.bf16.mxu0 0
    %595 = vmatpush1.bf16.msra.mxu0 0
    %596 = vmatprep.subr.bf16.mxu0 0
    %597 = vmatpush1.bf16.msra.mxu0 0
    %598 = vmatprep.subr.bf16.mxu0 0
    %599 = vmatpush1.bf16.msra.mxu0 0
    %600 = vmatprep.mubr.bf16.mxu0 0
    %601 = vmatmul.mubr.bf16.gmra.mrb[0].mxu0 %v496
    %v602 = vpop.f32.mrb[0].mxu0
    %v603 = vadd.f32 %v518, %v602
    %v604 = vpop.f32.mrb[0].mxu0
    %v605 = vpop.f32.mrb[0].mxu0
    %v606 = vpop.f32.mrb[0].mxu0
    %607 = vdwg.mxu0
    %v608 = vmax.f32 %v603, 0.0
    %v609 = vpack.c.bf16 %v608, %v608
    %v610 = vld [vmem:[#allocation11] sm:$0xf]
    %v611 = vld [vmem:[#allocation11 + $0x4] sm:$0xf]
    %v612 = vld [vmem:[#allocation11 + $0x8] sm:$0xf]
    %v613 = vld [vmem:[#allocation11 + $0xc] sm:$0xf]
    %v614 = vld [vmem:[#allocation11 + $0x10] sm:$0xf]
    %v615 = vld [vmem:[#allocation11 + $0x14] sm:$0xf]
    %v616 = vld [vmem:[#allocation11 + $0x18] sm:$0xf]
    %v617 = vld [vmem:[#allocation11 + $0x1c] sm:$0xf]
    %v618 = vld [vmem:[#allocation11 + $0x20] sm:$0xf]
    %v619 = vld [vmem:[#allocation11 + $0x24] sm:$0xf]
    %v620 = vld [vmem:[#allocation11 + $0x28] sm:$0xf]
    %v621 = vld [vmem:[#allocation11 + $0x2c] sm:$0xf]
    %v622 = vld [vmem:[#allocation11 + $0x30] sm:$0xf]
    %v623 = vld [vmem:[#allocation11 + $0x34] sm:$0xf]
    %v624 = vld [vmem:[#allocation11 + $0x38] sm:$0xf]
    %v625 = vld [vmem:[#allocation11 + $0x3c] sm:$0xf]
    %v626 = vld [vmem:[%s10] sm:$0x1]
    %v628 = vlaneseq
    %v629 = vshrl.u32 %v628, 7
    %v630 = vsub.s32 0, %v629
    %v631 = vrot.slane %v626, %v630
    %v649 = vunpack.c.l.b16 %v610
    %v650 = vunpack.c.l.b16 %v611
    %v651 = vunpack.c.l.b16 %v612
    %v652 = vunpack.c.l.b16 %v613
    %v653 = vunpack.c.l.b16 %v614
    %v654 = vunpack.c.l.b16 %v615
    %v655 = vunpack.c.l.b16 %v616
    %v656 = vunpack.c.l.b16 %v617
    %v657 = vunpack.c.l.b16 %v618
    %v658 = vunpack.c.l.b16 %v619
    %v659 = vunpack.c.l.b16 %v620
    %v660 = vunpack.c.l.b16 %v621
    %v661 = vunpack.c.l.b16 %v622
    %v662 = vunpack.c.l.b16 %v623
    %v663 = vunpack.c.l.b16 %v624
    %v664 = vunpack.c.l.b16 %v625
    %v665 = vpack.c.b16 %v650, %v649
    %v666 = vpack.c.b16 %v652, %v651
    %v667 = vpack.c.b16 %v654, %v653
    %v668 = vpack.c.b16 %v656, %v655
    %v669 = vpack.c.b16 %v658, %v657
    %v670 = vpack.c.b16 %v660, %v659
    %v671 = vpack.c.b16 %v662, %v661
    %v672 = vpack.c.b16 %v664, %v663
    %681 = vmatprep.subr.bf16.mxu0 0
    %682 = vmatpush1.bf16.msra.mxu0 %v665
    %683 = vmatprep.subr.bf16.mxu0 0
    %684 = vmatpush1.bf16.msra.mxu0 %v666
    %685 = vmatprep.subr.bf16.mxu0 0
    %686 = vmatpush1.bf16.msra.mxu0 %v667
    %687 = vmatprep.subr.bf16.mxu0 0
    %688 = vmatpush1.bf16.msra.mxu0 %v668
    %689 = vmatprep.subr.bf16.mxu0 0
    %690 = vmatpush1.bf16.msra.mxu0 %v669
    %691 = vmatprep.subr.bf16.mxu0 0
    %692 = vmatpush1.bf16.msra.mxu0 %v670
    %693 = vmatprep.subr.bf16.mxu0 0
    %694 = vmatpush1.bf16.msra.mxu0 %v671
    %695 = vmatprep.subr.bf16.mxu0 0
    %696 = vmatpush1.bf16.msra.mxu0 %v672
    %697 = vmatprep.subr.bf16.mxu0 0
    %698 = vmatpush1.bf16.msra.mxu0 0
    %699 = vmatprep.subr.bf16.mxu0 0
    %700 = vmatpush1.bf16.msra.mxu0 0
    %701 = vmatprep.subr.bf16.mxu0 0
    %702 = vmatpush1.bf16.msra.mxu0 0
    %703 = vmatprep.subr.bf16.mxu0 0
    %704 = vmatpush1.bf16.msra.mxu0 0
    %705 = vmatprep.subr.bf16.mxu0 0
    %706 = vmatpush1.bf16.msra.mxu0 0
    %707 = vmatprep.subr.bf16.mxu0 0
    %708 = vmatpush1.bf16.msra.mxu0 0
    %709 = vmatprep.subr.bf16.mxu0 0
    %710 = vmatpush1.bf16.msra.mxu0 0
    %711 = vmatprep.subr.bf16.mxu0 0
    %712 = vmatpush1.bf16.msra.mxu0 0
    %713 = vmatprep.mubr.bf16.mxu0 0
    %714 = vmatmul.mubr.bf16.gmra.mrb[0].mxu0 %v609
    %v715 = vpop.f32.mrb[0].mxu0
    %v716 = vadd.f32 %v631, %v715
    %v717 = vpop.f32.mrb[0].mxu0
    %v718 = vpop.f32.mrb[0].mxu0
    %v719 = vpop.f32.mrb[0].mxu0
    %720 = vdwg.mxu0
    %v721 = vpack.c.bf16 %v716, %v716
    %722 = vst [vmem:[#allocation13] sm:$0xf] %v721
    // Predicated region
    $region70: #{tpu_custom_call.1} parent=1 // pred_check
      _
    $region71: #{tpu_custom_call.1} parent=1 // pred_check_branch
      %724 = sbr.rel (0) target = $region73
    $region72: #{tpu_custom_call.1} parent=1 // pred_region
      %s726 = ssub.s32 64, 64
      %727 = vsyncadd [#allocation4], %s726
      %s729 = sshll.u32 [#allocation13], 4
      %s730 = int_to_ptr.vmem [resolvable:$true] %s729
      %732 = dma.vmem_to_hbm [thread:$0]  %s730, 64, %s11, [#allocation4]
    $region73: #{tpu_custom_call.1} parent=1 // pred_fallthru
      _
    // Predicated region
    $region74: #{tpu_custom_call.1} parent=1 // pred_check
      _
    $region75: #{tpu_custom_call.1} parent=1 // pred_check_branch
      %734 = sbr.rel (0) target = $region77
    $region76: #{tpu_custom_call.1} parent=1 // pred_region
      %735 = dma.done [#allocation4], 64
    $region77: #{tpu_custom_call.1} parent=1 // pred_fallthru
      _
    %736 = vsyncpa [#allocation3], 1
    %737 = vsyncpa [#allocation6], 1
    %738 = vsyncpa [#allocation9], 1
    %739 = vsyncpa [#allocation12], 1
    %740 = vsyncpa [#allocation4], 1

// kernel: tpu_custom_call.1
$region0: #{tpu_custom_call.1}
  #allocation0 [shape = 'u32[]', space=smem, size = 0x4, offset = 0x4, fixed_abs, tag = 'smem constant byte address 0x4 - core index']
  #allocation1 [shape = 'u32[144,128]{1,0:T(1,128)}', space=vmem, size = 0x12000, scoped, tag = 'internal scratch']
  %s0 = inlined_call_operand.hbm [shape: f32[8,32], index: 0, kind: input, shape index: {}]
  %s1 = inlined_call_operand.hbm [shape: bf16[32,256], index: 1, kind: input, shape index: {}]
  %s2 = inlined_call_operand.vmem [shape: f32[1,256], index: 2, kind: input, shape index: {}]
  %s3 = inlined_call_operand.hbm [shape: bf16[256,128], index: 3, kind: input, shape index: {}]
  %s4 = inlined_call_operand.vmem [shape: f32[1,128], index: 4, kind: input, shape index: {}]
  %s5 = inlined_call_operand.hbm [shape: bf16[128,128], index: 5, kind: input, shape index: {}]
  %s6 = inlined_call_operand.vmem [shape: f32[1,128], index: 6, kind: input, shape index: {}]
  %s7 = inlined_call_operand.hbm [shape: bf16[128,128], index: 7, kind: input, shape index: {}]
  %s8 = inlined_call_operand.vmem [shape: f32[1,128], index: 8, kind: input, shape index: {}]
  %s9 = inlined_call_operand.hbm [shape: bf16[128,128], index: 9, kind: input, shape index: {}]
  %s10 = inlined_call_operand.vmem [shape: f32[1,128], index: 10, kind: input, shape index: {}]
  %s11 = inlined_call_operand.hbm [shape: bf16[8,128], index: 11, kind: output, shape index: {}]
  %s12 = sld [smem:[#allocation0]]
  $region78: #{tpu_custom_call.1} parent=0
    _
  %s14 = ssub.s32 1, %s12
  %s15 = scalar_select 0, %s14, %s12
  $region1: #{tpu_custom_call.1} parent=0
    #allocation2 [shape = 'u8[4096]{0}', space=vmem, size = 0x1000, scoped, tag = 'input window, operand 0, single buffered']
    #allocation3 [shape = 's32[1]{0}', space=sflag, size = 0x4, scoped, tag = 'scoped memory for tpu_custom_call.1']
    #allocation4 [shape = 's32[1]{0}', space=sflag, size = 0x4, scoped, tag = 'scoped memory for tpu_custom_call.1']
    #allocation5 [shape = 'u8[16384]{0}', space=vmem, size = 0x4000, scoped, tag = 'input window, operand 1, single buffered']
    #allocation6 [shape = 's32[1]{0}', space=sflag, size = 0x4, scoped, tag = 'scoped memory for tpu_custom_call.1']
    #allocation7 [shape = 'u8[65536]{0}', space=vmem, size = 0x10000, scoped, tag = 'input window, operand 3, single buffered']
    #allocation8 [shape = 'u8[32768]{0}', space=vmem, size = 0x8000, scoped, tag = 'input window, operand 5, single buffered']
    #allocation9 [shape = 's32[1]{0}', space=sflag, size = 0x4, scoped, tag = 'scoped memory for tpu_custom_call.1']
    #allocation10 [shape = 'u8[32768]{0}', space=vmem, size = 0x8000, scoped, tag = 'input window, operand 7, single buffered']
    #allocation11 [shape = 'u8[32768]{0}', space=vmem, size = 0x8000, scoped, tag = 'input window, operand 9, single buffered']
    #allocation12 [shape = 's32[1]{0}', space=sflag, size = 0x4, scoped, tag = 'scoped memory for tpu_custom_call.1']
    #allocation13 [shape = 'u8[2048]{0}', space=vmem, size = 0x800, scoped, tag = 'output window, operand 0, single buffered']
    %16 = vsyncpa [#allocation3], 0
    %17 = vsyncpa [#allocation6], 0
    %18 = vsyncpa [#allocation9], 0
    %19 = vsyncpa [#allocation12], 0
    %20 = vsyncpa [#allocation4], 0
    // Predicated region
    $region2: #{tpu_custom_call.1} parent=1 // pred_check
      _
    $region3: #{tpu_custom_call.1} parent=1 // pred_check_branch
      %22 = sbr.rel (0) target = $region5
    $region4: #{tpu_custom_call.1} parent=1 // pred_region
      %s24 = ssub.s32 128, 128
      %25 = vsyncadd [#allocation3], %s24
      %s27 = sshll.u32 [#allocation2], 4
      %s28 = int_to_ptr.vmem [resolvable:$true] %s27
      %30 = dma.hbm_to_vmem [thread:$0]  %s0, 128, %s28, [#allocation3]
    $region5: #{tpu_custom_call.1} parent=1 // pred_fallthru
      _
    // Predicated region
    $region6: #{tpu_custom_call.1} parent=1 // pred_check
      _
    $region7: #{tpu_custom_call.1} parent=1 // pred_check_branch
      %32 = sbr.rel (0) target = $region9
    $region8: #{tpu_custom_call.1} parent=1 // pred_region
      %s34 = ssub.s32 512, 512
      %35 = vsyncadd [#allocation6], %s34
      %s36 = sshll.u32 [#allocation5], 4
      %s37 = int_to_ptr.vmem [resolvable:$true] %s36
      %42 = dma.hbm_to_vmem [thread:$0]  %s1, 512, %s37, [#allocation6], 128, 128, 8
    $region9: #{tpu_custom_call.1} parent=1 // pred_fallthru
      _
    // Predicated region
    $region10: #{tpu_custom_call.1} parent=1 // pred_check
      _
    $region11: #{tpu_custom_call.1} parent=1 // pred_check_branch
      %44 = sbr.rel (0) target = $region13
    $region12: #{tpu_custom_call.1} parent=1 // pred_region
      _
    $region13: #{tpu_custom_call.1} parent=1 // pred_fallthru
      _
    // Predicated region
    $region14: #{tpu_custom_call.1} parent=1 // pred_check
      _
    $region15: #{tpu_custom_call.1} parent=1 // pred_check_branch
      %46 = sbr.rel (0) target = $region17
    $region16: #{tpu_custom_call.1} parent=1 // pred_region
      %s48 = ssub.s32 2048, 2048
      %49 = vsyncadd [#allocation6], %s48
      %s50 = sshll.u32 [#allocation7], 4
      %s51 = int_to_ptr.vmem [resolvable:$true] %s50
      %56 = dma.hbm_to_vmem [thread:$0]  %s3, 2048, %s51, [#allocation6], 64, 64, 4
    $region17: #{tpu_custom_call.1} parent=1 // pred_fallthru
      _
    // Predicated region
    $region18: #{tpu_custom_call.1} parent=1 // pred_check
      _
    $region19: #{tpu_custom_call.1} parent=1 // pred_check_branch
      %58 = sbr.rel (0) target = $region21
    $region20: #{tpu_custom_call.1} parent=1 // pred_region
      _
    $region21: #{tpu_custom_call.1} parent=1 // pred_fallthru
      _
    // Predicated region
    $region22: #{tpu_custom_call.1} parent=1 // pred_check
      _
    $region23: #{tpu_custom_call.1} parent=1 // pred_check_branch
      %60 = sbr.rel (0) target = $region25
    $region24: #{tpu_custom_call.1} parent=1 // pred_region
      %s62 = ssub.s32 1024, 1024
      %63 = vsyncadd [#allocation9], %s62
      %s64 = sshll.u32 [#allocation8], 4
      %s65 = int_to_ptr.vmem [resolvable:$true] %s64
      %70 = dma.hbm_to_vmem [thread:$0]  %s5, 1024, %s65, [#allocation9], 64, 64, 4
    $region25: #{tpu_custom_call.1} parent=1 // pred_fallthru
      _
    // Predicated region
    $region26: #{tpu_custom_call.1} parent=1 // pred_check
      _
    $region27: #{tpu_custom_call.1} parent=1 // pred_check_branch
      %72 = sbr.rel (0) target = $region29
    $region28: #{tpu_custom_call.1} parent=1 // pred_region
      _
    $region29: #{tpu_custom_call.1} parent=1 // pred_fallthru
      _
    // Predicated region
    $region30: #{tpu_custom_call.1} parent=1 // pred_check
      _
    $region31: #{tpu_custom_call.1} parent=1 // pred_check_branch
      %74 = sbr.rel (0) target = $region33
    $region32: #{tpu_custom_call.1} parent=1 // pred_region
      %s76 = ssub.s32 1024, 1024
      %77 = vsyncadd [#allocation9], %s76
      %s78 = sshll.u32 [#allocation10], 4
      %s79 = int_to_ptr.vmem [resolvable:$true] %s78
      %84 = dma.hbm_to_vmem [thread:$0]  %s7, 1024, %s79, [#allocation9], 64, 64, 4
    $region33: #{tpu_custom_call.1} parent=1 // pred_fallthru
      _
    // Predicated region
    $region34: #{tpu_custom_call.1} parent=1 // pred_check
      _
    $region35: #{tpu_custom_call.1} parent=1 // pred_check_branch
      %86 = sbr.rel (0) target = $region37
    $region36: #{tpu_custom_call.1} parent=1 // pred_region
      _
    $region37: #{tpu_custom_call.1} parent=1 // pred_fallthru
      _
    // Predicated region
    $region38: #{tpu_custom_call.1} parent=1 // pred_check
      _
    $region39: #{tpu_custom_call.1} parent=1 // pred_check_branch
      %88 = sbr.rel (0) target = $region41
    $region40: #{tpu_custom_call.1} parent=1 // pred_region
      %s90 = ssub.s32 1024, 1024
      %91 = vsyncadd [#allocation12], %s90
      %s92 = sshll.u32 [#allocation11], 4
      %s93 = int_to_ptr.vmem [resolvable:$true] %s92
      %98 = dma.hbm_to_vmem [thread:$0]  %s9, 1024, %s93, [#allocation12], 64, 64, 4
    $region41: #{tpu_custom_call.1} parent=1 // pred_fallthru
      _
    // Predicated region
    $region42: #{tpu_custom_call.1} parent=1 // pred_check
      _
    $region43: #{tpu_custom_call.1} parent=1 // pred_check_branch
      %100 = sbr.rel (0) target = $region45
    $region44: #{tpu_custom_call.1} parent=1 // pred_region
      _
    $region45: #{tpu_custom_call.1} parent=1 // pred_fallthru
      _
    // Predicated region
    $region46: #{tpu_custom_call.1} parent=1 // pred_check
      _
    $region47: #{tpu_custom_call.1} parent=1 // pred_check_branch
      %102 = sbr.rel (0) target = $region49
    $region48: #{tpu_custom_call.1} parent=1 // pred_region
      %103 = dma.done [#allocation3], 128
    $region49: #{tpu_custom_call.1} parent=1 // pred_fallthru
      _
    // Predicated region
    $region50: #{tpu_custom_call.1} parent=1 // pred_check
      _
    $region51: #{tpu_custom_call.1} parent=1 // pred_check_branch
      %105 = sbr.rel (0) target = $region53
    $region52: #{tpu_custom_call.1} parent=1 // pred_region
      %106 = dma.done [#allocation6], 512
    $region53: #{tpu_custom_call.1} parent=1 // pred_fallthru
      _
    // Predicated region
    $region54: #{tpu_custom_call.1} parent=1 // pred_check
      _
    $region55: #{tpu_custom_call.1} parent=1 // pred_check_branch
      %108 = sbr.rel (0) target = $region57
    $region56: #{tpu_custom_call.1} parent=1 // pred_region
      %109 = dma.done [#allocation6], 2048
    $region57: #{tpu_custom_call.1} parent=1 // pred_fallthru
      _
    // Predicated region
    $region58: #{tpu_custom_call.1} parent=1 // pred_check
      _
    $region59: #{tpu_custom_call.1} parent=1 // pred_check_branch
      %111 = sbr.rel (0) target = $region61
    $region60: #{tpu_custom_call.1} parent=1 // pred_region
      %112 = dma.done [#allocation9], 1024
    $region61: #{tpu_custom_call.1} parent=1 // pred_fallthru
      _
    // Predicated region
    $region62: #{tpu_custom_call.1} parent=1 // pred_check
      _
    $region63: #{tpu_custom_call.1} parent=1 // pred_check_branch
      %114 = sbr.rel (0) target = $region65
    $region64: #{tpu_custom_call.1} parent=1 // pred_region
      %115 = dma.done [#allocation9], 1024
    $region65: #{tpu_custom_call.1} parent=1 // pred_fallthru
      _
    // Predicated region
    $region66: #{tpu_custom_call.1} parent=1 // pred_check
      _
    $region67: #{tpu_custom_call.1} parent=1 // pred_check_branch
      %117 = sbr.rel (0) target = $region69
    $region68: #{tpu_custom_call.1} parent=1 // pred_region
      %118 = dma.done [#allocation12], 1024
    $region69: #{tpu_custom_call.1} parent=1 // pred_fallthru
      _
    %v120 = vld [vmem:[#allocation2] sm:$0xff]
    %v121 = vpack.c.bf16 %v120, %v120
    %v122 = vld [vmem:[#allocation5] sm:$0xff]
    %v123 = vld [vmem:[#allocation5 + $0x8] sm:$0xff]
    %v124 = vld [vmem:[#allocation5 + $0x10] sm:$0xff]
    %v125 = vld [vmem:[#allocation5 + $0x18] sm:$0xff]
    %v126 = vld [vmem:[%s2] sm:$0x3]
    %v128 = vlaneseq
    %v129 = vshrl.u32 %v128, 7
    %v130 = vsub.s32 0, %v129
    %v131 = vrot.slane %v126, %v130
    %v132 = vlaneseq
    %v133 = vshrl.u32 %v132, 7
    %v134 = vsub.s32 1, %v133
    %v135 = vrot.slane %v126, %v134
    %v142 = vunpack.c.l.b16 %v122
    %v143 = vunpack.c.h.b16 %v122
    %v144 = vunpack.c.l.b16 %v123
    %v145 = vunpack.c.h.b16 %v123
    %v146 = vunpack.c.l.b16 %v124
    %v147 = vunpack.c.h.b16 %v124
    %v148 = vunpack.c.l.b16 %v125
    %v149 = vunpack.c.h.b16 %v125
    %v150 = vpack.c.b16 %v144, %v142
    %v151 = vpack.c.b16 %v145, %v143
    %v152 = vpack.c.b16 %v148, %v146
    %v153 = vpack.c.b16 %v149, %v147
    %vm158 = vcmask 261120
    %v160 = vsel %vm158, %v121, 0
    %162 = vmatprep.subr.bf16.mxu0 %v151
    %163 = vmatpush1.bf16.msra.mxu0 %v150
    %164 = vmatprep.subr.bf16.mxu0 %v153
    %165 = vmatpush1.bf16.msra.mxu0 %v152
    %166 = vmatprep.subr.bf16.mxu0 0
    %167 = vmatpush1.bf16.msra.mxu0 0
    %168 = vmatprep.subr.bf16.mxu0 0
    %169 = vmatpush1.bf16.msra.mxu0 0
    %170 = vmatprep.subr.bf16.mxu0 0
    %171 = vmatpush1.bf16.msra.mxu0 0
    %172 = vmatprep.subr.bf16.mxu0 0
    %173 = vmatpush1.bf16.msra.mxu0 0
    %174 = vmatprep.subr.bf16.mxu0 0
    %175 = vmatpush1.bf16.msra.mxu0 0
    %176 = vmatprep.subr.bf16.mxu0 0
    %177 = vmatpush1.bf16.msra.mxu0 0
    %178 = vmatprep.subr.bf16.mxu0 0
    %179 = vmatpush1.bf16.msra.mxu0 0
    %180 = vmatprep.subr.bf16.mxu0 0
    %181 = vmatpush1.bf16.msra.mxu0 0
    %182 = vmatprep.subr.bf16.mxu0 0
    %183 = vmatpush1.bf16.msra.mxu0 0
    %184 = vmatprep.subr.bf16.mxu0 0
    %185 = vmatpush1.bf16.msra.mxu0 0
    %186 = vmatprep.subr.bf16.mxu0 0
    %187 = vmatpush1.bf16.msra.mxu0 0
    %188 = vmatprep.subr.bf16.mxu0 0
    %189 = vmatpush1.bf16.msra.mxu0 0
    %190 = vmatprep.subr.bf16.mxu0 0
    %191 = vmatpush1.bf16.msra.mxu0 0
    %192 = vmatprep.subr.bf16.mxu0 0
    %193 = vmatpush1.bf16.msra.mxu0 0
    %194 = vmatprep.mubr.bf16.mxu0 0
    %195 = vmatmul.mubr.bf16.gmra.mrb[0].mxu0 %v160
    %v196 = vpop.f32.mrb[0].mxu0
    %v197 = vadd.f32 %v131, %v196
    %v198 = vpop.f32.mrb[0].mxu0
    %v199 = vadd.f32 %v135, %v198
    %v200 = vpop.f32.mrb[0].mxu0
    %v201 = vpop.f32.mrb[0].mxu0
    %202 = vdwg.mxu0
    %v203 = vmax.f32 %v197, 0.0
    %v204 = vmax.f32 %v199, 0.0
    %v205 = vpack.c.bf16 %v203, %v203
    %v206 = vpack.c.bf16 %v204, %v204
    %v207 = vld [vmem:[#allocation7] sm:$0xf]
    %v208 = vld [vmem:[#allocation7 + $0x4] sm:$0xf]
    %v209 = vld [vmem:[#allocation7 + $0x8] sm:$0xf]
    %v210 = vld [vmem:[#allocation7 + $0xc] sm:$0xf]
    %v211 = vld [vmem:[#allocation7 + $0x10] sm:$0xf]
    %v212 = vld [vmem:[#allocation7 + $0x14] sm:$0xf]
    %v213 = vld [vmem:[#allocation7 + $0x18] sm:$0xf]
    %v214 = vld [vmem:[#allocation7 + $0x1c] sm:$0xf]
    %v215 = vld [vmem:[#allocation7 + $0x20] sm:$0xf]
    %v216 = vld [vmem:[#allocation7 + $0x24] sm:$0xf]
    %v217 = vld [vmem:[#allocation7 + $0x28] sm:$0xf]
    %v218 = vld [vmem:[#allocation7 + $0x2c] sm:$0xf]
    %v219 = vld [vmem:[#allocation7 + $0x30] sm:$0xf]
    %v220 = vld [vmem:[#allocation7 + $0x34] sm:$0xf]
    %v221 = vld [vmem:[#allocation7 + $0x38] sm:$0xf]
    %v222 = vld [vmem:[#allocation7 + $0x3c] sm:$0xf]
    %v223 = vld [vmem:[#allocation7 + $0x40] sm:$0xf]
    %v224 = vld [vmem:[#allocation7 + $0x44] sm:$0xf]
    %v225 = vld [vmem:[#allocation7 + $0x48] sm:$0xf]
    %v226 = vld [vmem:[#allocation7 + $0x4c] sm:$0xf]
    %v227 = vld [vmem:[#allocation7 + $0x50] sm:$0xf]
    %v228 = vld [vmem:[#allocation7 + $0x54] sm:$0xf]
    %v229 = vld [vmem:[#allocation7 + $0x58] sm:$0xf]
    %v230 = vld [vmem:[#allocation7 + $0x5c] sm:$0xf]
    %v231 = vld [vmem:[#allocation7 + $0x60] sm:$0xf]
    %v232 = vld [vmem:[#allocation7 + $0x64] sm:$0xf]
    %v233 = vld [vmem:[#allocation7 + $0x68] sm:$0xf]
    %v234 = vld [vmem:[#allocation7 + $0x6c] sm:$0xf]
    %v235 = vld [vmem:[#allocation7 + $0x70] sm:$0xf]
    %v236 = vld [vmem:[#allocation7 + $0x74] sm:$0xf]
    %v237 = vld [vmem:[#allocation7 + $0x78] sm:$0xf]
    %v238 = vld [vmem:[#allocation7 + $0x7c] sm:$0xf]
    %v239 = vld [vmem:[%s4] sm:$0x1]
    %v241 = vlaneseq
    %v242 = vshrl.u32 %v241, 7
    %v243 = vsub.s32 0, %v242
    %v244 = vrot.slane %v239, %v243
    %v278 = vunpack.c.l.b16 %v207
    %v279 = vunpack.c.l.b16 %v208
    %v280 = vunpack.c.l.b16 %v209
    %v281 = vunpack.c.l.b16 %v210
    %v282 = vunpack.c.l.b16 %v211
    %v283 = vunpack.c.l.b16 %v212
    %v284 = vunpack.c.l.b16 %v213
    %v285 = vunpack.c.l.b16 %v214
    %v286 = vunpack.c.l.b16 %v215
    %v287 = vunpack.c.l.b16 %v216
    %v288 = vunpack.c.l.b16 %v217
    %v289 = vunpack.c.l.b16 %v218
    %v290 = vunpack.c.l.b16 %v219
    %v291 = vunpack.c.l.b16 %v220
    %v292 = vunpack.c.l.b16 %v221
    %v293 = vunpack.c.l.b16 %v222
    %v294 = vunpack.c.l.b16 %v223
    %v295 = vunpack.c.l.b16 %v224
    %v296 = vunpack.c.l.b16 %v225
    %v297 = vunpack.c.l.b16 %v226
    %v298 = vunpack.c.l.b16 %v227
    %v299 = vunpack.c.l.b16 %v228
    %v300 = vunpack.c.l.b16 %v229
    %v301 = vunpack.c.l.b16 %v230
    %v302 = vunpack.c.l.b16 %v231
    %v303 = vunpack.c.l.b16 %v232
    %v304 = vunpack.c.l.b16 %v233
    %v305 = vunpack.c.l.b16 %v234
    %v306 = vunpack.c.l.b16 %v235
    %v307 = vunpack.c.l.b16 %v236
    %v308 = vunpack.c.l.b16 %v237
    %v309 = vunpack.c.l.b16 %v238
    %v310 = vpack.c.b16 %v279, %v278
    %v311 = vpack.c.b16 %v281, %v280
    %v312 = vpack.c.b16 %v283, %v282
    %v313 = vpack.c.b16 %v285, %v284
    %v314 = vpack.c.b16 %v287, %v286
    %v315 = vpack.c.b16 %v289, %v288
    %v316 = vpack.c.b16 %v291, %v290
    %v317 = vpack.c.b16 %v293, %v292
    %v318 = vpack.c.b16 %v295, %v294
    %v319 = vpack.c.b16 %v297, %v296
    %v320 = vpack.c.b16 %v299, %v298
    %v321 = vpack.c.b16 %v301, %v300
    %v322 = vpack.c.b16 %v303, %v302
    %v323 = vpack.c.b16 %v305, %v304
    %v324 = vpack.c.b16 %v307, %v306
    %v325 = vpack.c.b16 %v309, %v308
    %342 = vmatprep.subr.bf16.mxu0 0
    %343 = vmatpush1.bf16.msra.mxu0 %v310
    %344 = vmatprep.subr.bf16.mxu0 0
    %345 = vmatpush1.bf16.msra.mxu0 %v311
    %346 = vmatprep.subr.bf16.mxu0 0
    %347 = vmatpush1.bf16.msra.mxu0 %v312
    %348 = vmatprep.subr.bf16.mxu0 0
    %349 = vmatpush1.bf16.msra.mxu0 %v313
    %350 = vmatprep.subr.bf16.mxu0 0
    %351 = vmatpush1.bf16.msra.mxu0 %v314
    %352 = vmatprep.subr.bf16.mxu0 0
    %353 = vmatpush1.bf16.msra.mxu0 %v315
    %354 = vmatprep.subr.bf16.mxu0 0
    %355 = vmatpush1.bf16.msra.mxu0 %v316
    %356 = vmatprep.subr.bf16.mxu0 0
    %357 = vmatpush1.bf16.msra.mxu0 %v317
    %358 = vmatprep.subr.bf16.mxu0 0
    %359 = vmatpush1.bf16.msra.mxu0 %v318
    %360 = vmatprep.subr.bf16.mxu0 0
    %361 = vmatpush1.bf16.msra.mxu0 %v319
    %362 = vmatprep.subr.bf16.mxu0 0
    %363 = vmatpush1.bf16.msra.mxu0 %v320
    %364 = vmatprep.subr.bf16.mxu0 0
    %365 = vmatpush1.bf16.msra.mxu0 %v321
    %366 = vmatprep.subr.bf16.mxu0 0
    %367 = vmatpush1.bf16.msra.mxu0 %v322
    %368 = vmatprep.subr.bf16.mxu0 0
    %369 = vmatpush1.bf16.msra.mxu0 %v323
    %370 = vmatprep.subr.bf16.mxu0 0
    %371 = vmatpush1.bf16.msra.mxu0 %v324
    %372 = vmatprep.subr.bf16.mxu0 0
    %373 = vmatpush1.bf16.msra.mxu0 %v325
    %374 = vmatprep.mubr.bf16.mxu0 %v206
    %375 = vmatmul.mubr.bf16.gmra.mrb[0].mxu0 %v205
    %v376 = vpop.f32.mrb[0].mxu0
    %v377 = vadd.f32 %v244, %v376
    %v378 = vpop.f32.mrb[0].mxu0
    %v379 = vpop.f32.mrb[0].mxu0
    %v380 = vpop.f32.mrb[0].mxu0
    %381 = vdwg.mxu0
    %v382 = vmax.f32 %v377, 0.0
    %v383 = vpack.c.bf16 %v382, %v382
    %v384 = vld [vmem:[#allocation8] sm:$0xf]
    %v385 = vld [vmem:[#allocation8 + $0x4] sm:$0xf]
    %v386 = vld [vmem:[#allocation8 + $0x8] sm:$0xf]
    %v387 = vld [vmem:[#allocation8 + $0xc] sm:$0xf]
    %v388 = vld [vmem:[#allocation8 + $0x10] sm:$0xf]
    %v389 = vld [vmem:[#allocation8 + $0x14] sm:$0xf]
    %v390 = vld [vmem:[#allocation8 + $0x18] sm:$0xf]
    %v391 = vld [vmem:[#allocation8 + $0x1c] sm:$0xf]
    %v392 = vld [vmem:[#allocation8 + $0x20] sm:$0xf]
    %v393 = vld [vmem:[#allocation8 + $0x24] sm:$0xf]
    %v394 = vld [vmem:[#allocation8 + $0x28] sm:$0xf]
    %v395 = vld [vmem:[#allocation8 + $0x2c] sm:$0xf]
    %v396 = vld [vmem:[#allocation8 + $0x30] sm:$0xf]
    %v397 = vld [vmem:[#allocation8 + $0x34] sm:$0xf]
    %v398 = vld [vmem:[#allocation8 + $0x38] sm:$0xf]
    %v399 = vld [vmem:[#allocation8 + $0x3c] sm:$0xf]
    %v400 = vld [vmem:[%s6] sm:$0x1]
    %v402 = vlaneseq
    %v403 = vshrl.u32 %v402, 7
    %v404 = vsub.s32 0, %v403
    %v405 = vrot.slane %v400, %v404
    %v423 = vunpack.c.l.b16 %v384
    %v424 = vunpack.c.l.b16 %v385
    %v425 = vunpack.c.l.b16 %v386
    %v426 = vunpack.c.l.b16 %v387
    %v427 = vunpack.c.l.b16 %v388
    %v428 = vunpack.c.l.b16 %v389
    %v429 = vunpack.c.l.b16 %v390
    %v430 = vunpack.c.l.b16 %v391
    %v431 = vunpack.c.l.b16 %v392
    %v432 = vunpack.c.l.b16 %v393
    %v433 = vunpack.c.l.b16 %v394
    %v434 = vunpack.c.l.b16 %v395
    %v435 = vunpack.c.l.b16 %v396
    %v436 = vunpack.c.l.b16 %v397
    %v437 = vunpack.c.l.b16 %v398
    %v438 = vunpack.c.l.b16 %v399
    %v439 = vpack.c.b16 %v424, %v423
    %v440 = vpack.c.b16 %v426, %v425
    %v441 = vpack.c.b16 %v428, %v427
    %v442 = vpack.c.b16 %v430, %v429
    %v443 = vpack.c.b16 %v432, %v431
    %v444 = vpack.c.b16 %v434, %v433
    %v445 = vpack.c.b16 %v436, %v435
    %v446 = vpack.c.b16 %v438, %v437
    %455 = vmatprep.subr.bf16.mxu0 0
    %456 = vmatpush1.bf16.msra.mxu0 %v439
    %457 = vmatprep.subr.bf16.mxu0 0
    %458 = vmatpush1.bf16.msra.mxu0 %v440
    %459 = vmatprep.subr.bf16.mxu0 0
    %460 = vmatpush1.bf16.msra.mxu0 %v441
    %461 = vmatprep.subr.bf16.mxu0 0
    %462 = vmatpush1.bf16.msra.mxu0 %v442
    %463 = vmatprep.subr.bf16.mxu0 0
    %464 = vmatpush1.bf16.msra.mxu0 %v443
    %465 = vmatprep.subr.bf16.mxu0 0
    %466 = vmatpush1.bf16.msra.mxu0 %v444
    %467 = vmatprep.subr.bf16.mxu0 0
    %468 = vmatpush1.bf16.msra.mxu0 %v445
    %469 = vmatprep.subr.bf16.mxu0 0
    %470 = vmatpush1.bf16.msra.mxu0 %v446
    %471 = vmatprep.subr.bf16.mxu0 0
    %472 = vmatpush1.bf16.msra.mxu0 0
    %473 = vmatprep.subr.bf16.mxu0 0
    %474 = vmatpush1.bf16.msra.mxu0 0
    %475 = vmatprep.subr.bf16.mxu0 0
    %476 = vmatpush1.bf16.msra.mxu0 0
    %477 = vmatprep.subr.bf16.mxu0 0
    %478 = vmatpush1.bf16.msra.mxu0 0
    %479 = vmatprep.subr.bf16.mxu0 0
    %480 = vmatpush1.bf16.msra.mxu0 0
    %481 = vmatprep.subr.bf16.mxu0 0
    %482 = vmatpush1.bf16.msra.mxu0 0
    %483 = vmatprep.subr.bf16.mxu0 0
    %484 = vmatpush1.bf16.msra.mxu0 0
    %485 = vmatprep.subr.bf16.mxu0 0
    %486 = vmatpush1.bf16.msra.mxu0 0
    %487 = vmatprep.mubr.bf16.mxu0 0
    %488 = vmatmul.mubr.bf16.gmra.mrb[0].mxu0 %v383
    %v489 = vpop.f32.mrb[0].mxu0
    %v490 = vadd.f32 %v405, %v489
    %v491 = vpop.f32.mrb[0].mxu0
    %v492 = vpop.f32.mrb[0].mxu0
    %v493 = vpop.f32.mrb[0].mxu0
    %494 = vdwg.mxu0
    %v495 = vmax.f32 %v490, 0.0
    %v496 = vpack.c.bf16 %v495, %v495
    %v497 = vld [vmem:[#allocation10] sm:$0xf]
    %v498 = vld [vmem:[#allocation10 + $0x4] sm:$0xf]
    %v499 = vld [vmem:[#allocation10 + $0x8] sm:$0xf]
    %v500 = vld [vmem:[#allocation10 + $0xc] sm:$0xf]
    %v501 = vld [vmem:[#allocation10 + $0x10] sm:$0xf]
    %v502 = vld [vmem:[#allocation10 + $0x14] sm:$0xf]
    %v503 = vld [vmem:[#allocation10 + $0x18] sm:$0xf]
    %v504 = vld [vmem:[#allocation10 + $0x1c] sm:$0xf]
    %v505 = vld [vmem:[#allocation10 + $0x20] sm:$0xf]
    %v506 = vld [vmem:[#allocation10 + $0x24] sm:$0xf]
    %v507 = vld [vmem:[#allocation10 + $0x28] sm:$0xf]
    %v508 = vld [vmem:[#allocation10 + $0x2c] sm:$0xf]
    %v509 = vld [vmem:[#allocation10 + $0x30] sm:$0xf]
    %v510 = vld [vmem:[#allocation10 + $0x34] sm:$0xf]
    %v511 = vld [vmem:[#allocation10 + $0x38] sm:$0xf]
    %v512 = vld [vmem:[#allocation10 + $0x3c] sm:$0xf]
    %v513 = vld [vmem:[%s8] sm:$0x1]
    %v515 = vlaneseq
    %v516 = vshrl.u32 %v515, 7
    %v517 = vsub.s32 0, %v516
    %v518 = vrot.slane %v513, %v517
    %v536 = vunpack.c.l.b16 %v497
    %v537 = vunpack.c.l.b16 %v498
    %v538 = vunpack.c.l.b16 %v499
    %v539 = vunpack.c.l.b16 %v500
    %v540 = vunpack.c.l.b16 %v501
    %v541 = vunpack.c.l.b16 %v502
    %v542 = vunpack.c.l.b16 %v503
    %v543 = vunpack.c.l.b16 %v504
    %v544 = vunpack.c.l.b16 %v505
    %v545 = vunpack.c.l.b16 %v506
    %v546 = vunpack.c.l.b16 %v507
    %v547 = vunpack.c.l.b16 %v508
    %v548 = vunpack.c.l.b16 %v509
    %v549 = vunpack.c.l.b16 %v510
    %v550 = vunpack.c.l.b16 %v511
    %v551 = vunpack.c.l.b16 %v512
    %v552 = vpack.c.b16 %v537, %v536
    %v553 = vpack.c.b16 %v539, %v538
    %v554 = vpack.c.b16 %v541, %v540
    %v555 = vpack.c.b16 %v543, %v542
    %v556 = vpack.c.b16 %v545, %v544
    %v557 = vpack.c.b16 %v547, %v546
    %v558 = vpack.c.b16 %v549, %v548
    %v559 = vpack.c.b16 %v551, %v550
    %568 = vmatprep.subr.bf16.mxu0 0
    %569 = vmatpush1.bf16.msra.mxu0 %v552
    %570 = vmatprep.subr.bf16.mxu0 0
    %571 = vmatpush1.bf16.msra.mxu0 %v553
    %572 = vmatprep.subr.bf16.mxu0 0
    %573 = vmatpush1.bf16.msra.mxu0 %v554
    %574 = vmatprep.subr.bf16.mxu0 0
    %575 = vmatpush1.bf16.msra.mxu0 %v555
    %576 = vmatprep.subr.bf16.mxu0 0
    %577 = vmatpush1.bf16.msra.mxu0 %v556
    %578 = vmatprep.subr.bf16.mxu0 0
    %579 = vmatpush1.bf16.msra.mxu0 %v557
    %580 = vmatprep.subr.bf16.mxu0 0
    %581 = vmatpush1.bf16.msra.mxu0 %v558
    %582 = vmatprep.subr.bf16.mxu0 0
    %583 = vmatpush1.bf16.msra.mxu0 %v559
    %584 = vmatprep.subr.bf16.mxu0 0
    %585 = vmatpush1.bf16.msra.mxu0 0
    %586 = vmatprep.subr.bf16.mxu0 0
    %587 = vmatpush1.bf16.msra.mxu0 0
    %588 = vmatprep.subr.bf16.mxu0 0
    %589 = vmatpush1.bf16.msra.mxu0 0
    %590 = vmatprep.subr.bf16.mxu0 0
    %591 = vmatpush1.bf16.msra.mxu0 0
    %592 = vmatprep.subr.bf16.mxu0 0
    %593 = vmatpush1.bf16.msra.mxu0 0
    %594 = vmatprep.subr.bf16.mxu0 0
    %595 = vmatpush1.bf16.msra.mxu0 0
    %596 = vmatprep.subr.bf16.mxu0 0
    %597 = vmatpush1.bf16.msra.mxu0 0
    %598 = vmatprep.subr.bf16.mxu0 0
    %599 = vmatpush1.bf16.msra.mxu0 0
    %600 = vmatprep.mubr.bf16.mxu0 0
    %601 = vmatmul.mubr.bf16.gmra.mrb[0].mxu0 %v496
    %v602 = vpop.f32.mrb[0].mxu0
    %v603 = vadd.f32 %v518, %v602
    %v604 = vpop.f32.mrb[0].mxu0
    %v605 = vpop.f32.mrb[0].mxu0
    %v606 = vpop.f32.mrb[0].mxu0
    %607 = vdwg.mxu0
    %v608 = vmax.f32 %v603, 0.0
    %v609 = vpack.c.bf16 %v608, %v608
    %v610 = vld [vmem:[#allocation11] sm:$0xf]
    %v611 = vld [vmem:[#allocation11 + $0x4] sm:$0xf]
    %v612 = vld [vmem:[#allocation11 + $0x8] sm:$0xf]
    %v613 = vld [vmem:[#allocation11 + $0xc] sm:$0xf]
    %v614 = vld [vmem:[#allocation11 + $0x10] sm:$0xf]
    %v615 = vld [vmem:[#allocation11 + $0x14] sm:$0xf]
    %v616 = vld [vmem:[#allocation11 + $0x18] sm:$0xf]
    %v617 = vld [vmem:[#allocation11 + $0x1c] sm:$0xf]
    %v618 = vld [vmem:[#allocation11 + $0x20] sm:$0xf]
    %v619 = vld [vmem:[#allocation11 + $0x24] sm:$0xf]
    %v620 = vld [vmem:[#allocation11 + $0x28] sm:$0xf]
    %v621 = vld [vmem:[#allocation11 + $0x2c] sm:$0xf]
    %v622 = vld [vmem:[#allocation11 + $0x30] sm:$0xf]
    %v623 = vld [vmem:[#allocation11 + $0x34] sm:$0xf]
    %v624 = vld [vmem:[#allocation11 + $0x38] sm:$0xf]
    %v625 = vld [vmem:[#allocation11 + $0x3c] sm:$0xf]
    %v626 = vld [vmem:[%s10] sm:$0x1]
    %v628 = vlaneseq
    %v629 = vshrl.u32 %v628, 7
    %v630 = vsub.s32 0, %v629
    %v631 = vrot.slane %v626, %v630
    %v649 = vunpack.c.l.b16 %v610
    %v650 = vunpack.c.l.b16 %v611
    %v651 = vunpack.c.l.b16 %v612
    %v652 = vunpack.c.l.b16 %v613
    %v653 = vunpack.c.l.b16 %v614
    %v654 = vunpack.c.l.b16 %v615
    %v655 = vunpack.c.l.b16 %v616
    %v656 = vunpack.c.l.b16 %v617
    %v657 = vunpack.c.l.b16 %v618
    %v658 = vunpack.c.l.b16 %v619
    %v659 = vunpack.c.l.b16 %v620
    %v660 = vunpack.c.l.b16 %v621
    %v661 = vunpack.c.l.b16 %v622
    %v662 = vunpack.c.l.b16 %v623
    %v663 = vunpack.c.l.b16 %v624
    %v664 = vunpack.c.l.b16 %v625
    %v665 = vpack.c.b16 %v650, %v649
    %v666 = vpack.c.b16 %v652, %v651
    %v667 = vpack.c.b16 %v654, %v653
    %v668 = vpack.c.b16 %v656, %v655
    %v669 = vpack.c.b16 %v658, %v657
    %v670 = vpack.c.b16 %v660, %v659
    %v671 = vpack.c.b16 %v662, %v661
    %v672 = vpack.c.b16 %v664, %v663
    %681 = vmatprep.subr.bf16.mxu0 0
    %682 = vmatpush1.bf16.msra.mxu0 %v665
    %683 = vmatprep.subr.bf16.mxu0 0
    %684 = vmatpush1.bf16.msra.mxu0 %v666
    %685 = vmatprep.subr.bf16.mxu0 0
    %686 = vmatpush1.bf16.msra.mxu0 %v667
    %687 = vmatprep.subr.bf16.mxu0 0
    %688 = vmatpush1.bf16.msra.mxu0 %v668
    %689 = vmatprep.subr.bf16.mxu0 0
    %690 = vmatpush1.bf16.msra.mxu0 %v669
    %691 = vmatprep.subr.bf16.mxu0 0
    %692 = vmatpush1.bf16.msra.mxu0 %v670
    %693 = vmatprep.subr.bf16.mxu0 0
    %694 = vmatpush1.bf16.msra.mxu0 %v671
    %695 = vmatprep.subr.bf16.mxu0 0
    %696 = vmatpush1.bf16.msra.mxu0 %v672
    %697 = vmatprep.subr.bf16.mxu0 0
    %698 = vmatpush1.bf16.msra.mxu0 0
    %699 = vmatprep.subr.bf16.mxu0 0
    %700 = vmatpush1.bf16.msra.mxu0 0
    %701 = vmatprep.subr.bf16.mxu0 0
    %702 = vmatpush1.bf16.msra.mxu0 0
    %703 = vmatprep.subr.bf16.mxu0 0
    %704 = vmatpush1.bf16.msra.mxu0 0
    %705 = vmatprep.subr.bf16.mxu0 0
    %706 = vmatpush1.bf16.msra.mxu0 0
    %707 = vmatprep.subr.bf16.mxu0 0
    %708 = vmatpush1.bf16.msra.mxu0 0
    %709 = vmatprep.subr.bf16.mxu0 0
    %710 = vmatpush1.bf16.msra.mxu0 0
    %711 = vmatprep.subr.bf16.mxu0 0
    %712 = vmatpush1.bf16.msra.mxu0 0
    %713 = vmatprep.mubr.bf16.mxu0 0
    %714 = vmatmul.mubr.bf16.gmra.mrb[0].mxu0 %v609
    %v715 = vpop.f32.mrb[0].mxu0
    %v716 = vadd.f32 %v631, %v715
    %v717 = vpop.f32.mrb[0].mxu0
    %v718 = vpop.f32.mrb[0].mxu0
    %v719 = vpop.f32.mrb[0].mxu0
    %720 = vdwg.mxu0
    %v721 = vpack.c.bf16 %v716, %v716
    %722 = vst [vmem:[#allocation13] sm:$0xf] %v721
    // Predicated region
    $region70: #{tpu_custom_call.1} parent=1 // pred_check
      _
    $region71: #{tpu_custom_call.1} parent=1 // pred_check_branch
      %724 = sbr.rel (0) target = $region73
    $region72: #{tpu_custom_call.1} parent=1 // pred_region
      %s726 = ssub.s32 64, 64
      %727 = vsyncadd [#allocation4], %s726
      %s729 = sshll.u32 [#allocation13], 4
      %s730 = int_to_ptr.vmem [resolvable:$true] %s729
      %732 = dma.vmem_to_hbm [thread:$0]  %s730, 64, %s11, [#allocation4]
    $region73: #{tpu_custom_call.1} parent=1 // pred_fallthru
      _
    // Predicated region
    $region74: #{tpu_custom_call.1} parent=1 // pred_check
      _
    $region75: #{tpu_custom_call.1} parent=1 // pred_check_branch
      %734 = sbr.rel (0) target = $region77
    $region76: #{tpu_custom_call.1} parent=1 // pred_region
      %735 = dma.done [#allocation4], 64
    $region77: #{tpu_custom_call.1} parent=1 // pred_fallthru
      _
    %736 = vsyncpa [#allocation3], 1
    %737 = vsyncpa [#allocation6], 1
    %738 = vsyncpa [#allocation9], 1
    %739 = vsyncpa [#allocation12], 1
    %740 = vsyncpa [#allocation4], 1

</llo_original>
